<compile_context>
chip_gen: v7x
topology: tpu7x:2x2x1
jax: 0.10.0
libtpu: 0.0.40
codegen_flags: <defaults>
</compile_context>

<pallas_src>
import functools

import jax
import jax.numpy as jnp
import numpy as np
from jax import lax
from jax.experimental import pallas as pl
from jax.experimental.pallas import tpu as pltpu


def _lstm_fused_kernel(T, B, H,
                       x_ref, wih_ref, whh_ref, b_ref, h0_ref, c0_ref,
                       wfc_ref, bfc_ref, out_ref, hlast_scr):
    """Whole LSTM forward (recurrence + final fc) in one invocation.

    x_ref       : (T*B, E)  embedded tokens, time-major, flattened
    wih_ref     : (E, 4H)   input -> gates weight
    whh_ref     : (H, 4H)   hidden -> gates weight
    b_ref       : (1, 4H)   combined bias (b_ih + b_hh)
    h0/c0_ref   : (B, H)    initial state
    wfc_ref     : (H, O),  bfc_ref : (1, O)
    out_ref     : (T, O)
    hlast_scr   : (T, H)    VMEM scratch collecting h_t[B-1] for the final fc
    """
    w_ih = wih_ref[...]
    w_hh = whh_ref[...]
    bias = b_ref[...]

    # Hoisted input projection: one MXU call covers every time step.
    gates_x = (jnp.dot(x_ref[...], w_ih, preferred_element_type=jnp.float32)
               + bias)                                           # (T*B, 4H)

    h = h0_ref[...]                                              # (B, H)
    c = c0_ref[...]                                              # (B, H)

    # Sequential recurrence, statically unrolled (T small & static).
    for t in range(T):
        gates = (gates_x[t * B:(t + 1) * B, :]
                 + jnp.dot(h, w_hh, preferred_element_type=jnp.float32))

        # One lane-dense sigmoid over [ i | f | g | o ]; tanh only on g.
        sg = jax.nn.sigmoid(gates)                               # (B, 4H)
        i_g = sg[:, 0 * H:1 * H]
        f_g = sg[:, 1 * H:2 * H]
        o_g = sg[:, 3 * H:4 * H]
        g_g = jnp.tanh(gates[:, 2 * H:3 * H])

        c = f_g * c + i_g * g_g
        h = o_g * jnp.tanh(c)

        # Collect out[t, -1, :] (last element along the LSTM batch axis).
        hlast_scr[t:t + 1, :] = h[B - 1:B, :]

    # Final fc applied once to the lane-dense (T, H) slab.
    out_ref[...] = (jnp.dot(hlast_scr[...], wfc_ref[...],
                            preferred_element_type=jnp.float32)
                    + bfc_ref[...])


@jax.jit
def lstm_forward(x_emb, w_ih, w_hh, b, h0, c0, w_fc, b_fc):
    T, B, E = x_emb.shape
    H = h0.shape[1]
    O = w_fc.shape[1]

    x2d = x_emb.reshape(T * B, E)

    vmem = pl.BlockSpec(memory_space=pltpu.MemorySpace.VMEM)
    out = pl.pallas_call(
        functools.partial(_lstm_fused_kernel, T, B, H),
        out_shape=jax.ShapeDtypeStruct((T, O), jnp.float32),
        in_specs=[vmem] * 8,
        out_specs=vmem,
        scratch_shapes=[pltpu.VMEM((T, H), jnp.float32)],
    )(x2d, w_ih, w_hh, b, h0, c0, w_fc, b_fc)
    return out


def lstm_forward_ref(x_emb, w_ih, w_hh, b, h0, c0, w_fc, b_fc):
    """Pure-JAX reference matching PyTorch nn.LSTM (gate order i,f,g,o)."""
    def step(carry, x_t):
        h, c = carry
        gates = x_t @ w_ih + h @ w_hh + b[0]
        i, f, g, o = jnp.split(gates, 4, axis=-1)
        i = jax.nn.sigmoid(i)
        f = jax.nn.sigmoid(f)
        g = jnp.tanh(g)
        o = jax.nn.sigmoid(o)
        c = f * c + i * g
        h = o * jnp.tanh(c)
        return (h, c), h

    (_, _), hs = lax.scan(step, (h0, c0), x_emb)                 # (T, B, H)
    return hs[:, -1, :] @ w_fc + b_fc[0]


if __name__ == "__main__":
    # ---- small, module-consistent config -------------------------------
    vocab_size = 100
    embedding_dim = 32     # args.embedding_dim
    hidden_dim = 32        # args.hidden_dim
    output_dim = 1         # args.output_dim
    batch_size = 8         # T (LSTM time axis, due to batch_first=False)
    seq_len = 16           # B (LSTM batch axis)

    key = jax.random.PRNGKey(0)
    k = jax.random.split(key, 10)

    # deterministic parameter init (synthetic, not a checkpoint)
    emb_table = jax.random.normal(k[0], (vocab_size, embedding_dim), jnp.float32) * 0.1
    w_ih = jax.random.normal(k[1], (embedding_dim, 4 * hidden_dim), jnp.float32) * 0.1
    w_hh = jax.random.normal(k[2], (hidden_dim, 4 * hidden_dim), jnp.float32) * 0.1
    b_ih = jax.random.normal(k[3], (4 * hidden_dim,), jnp.float32) * 0.1
    b_hh = jax.random.normal(k[4], (4 * hidden_dim,), jnp.float32) * 0.1
    b = (b_ih + b_hh).reshape(1, 4 * hidden_dim)
    w_fc = jax.random.normal(k[5], (hidden_dim, output_dim), jnp.float32) * 0.1
    b_fc = jax.random.normal(k[6], (output_dim,), jnp.float32).reshape(1, output_dim)

    # deterministic stand-ins for torch.randn h0/c0 (num_layers=1, not bidir);
    # LSTM "batch" axis is seq_len because batch_first=False.
    h0 = jax.random.normal(k[7], (seq_len, hidden_dim), jnp.float32)
    c0 = jax.random.normal(k[8], (seq_len, hidden_dim), jnp.float32)

    # token ids (batch, seq)
    x = jax.random.randint(k[9], (batch_size, seq_len), 0, vocab_size, jnp.int32)

    # embedding + (identity) dropout -- plain JAX glue
    x_emb = jnp.take(emb_table, x, axis=0)                       # (T, B, E)

    out = lstm_forward(x_emb, w_ih, w_hh, b, h0, c0, w_fc, b_fc)
    out = jax.block_until_ready(out)

    # PyTorch .squeeze(0) semantics: only squeezes if dim0 == 1
    if out.shape[0] == 1:
        out = out[0]

    ref = lstm_forward_ref(x_emb, w_ih, w_hh, b, h0, c0, w_fc, b_fc)
    ref = jax.block_until_ready(ref)

    np.testing.assert_allclose(np.asarray(out), np.asarray(ref),
                               rtol=1e-5, atol=1e-5)
    print("KERNEL_OK")
</pallas_src>

<mosaic_0001>
module attributes {stable_mosaic.version = 11 : i64} {
  func.func @_lstm_fused_kernel(%arg0: memref<128x32xf32, #tpu.memory_space<vmem>>, %arg1: memref<32x128xf32, #tpu.memory_space<vmem>>, %arg2: memref<32x128xf32, #tpu.memory_space<vmem>>, %arg3: memref<1x128xf32, #tpu.memory_space<vmem>>, %arg4: memref<16x32xf32, #tpu.memory_space<vmem>>, %arg5: memref<16x32xf32, #tpu.memory_space<vmem>>, %arg6: memref<32x1xf32, #tpu.memory_space<vmem>>, %arg7: memref<1x1xf32, #tpu.memory_space<vmem>>, %arg8: memref<8x1xf32, #tpu.memory_space<vmem>>, %arg9: memref<8x32xf32, #tpu.memory_space<vmem>>) attributes {dimension_semantics = [], scalar_prefetch = 0 : i64, scratch_operands = 1 : i64, tpu.core_type = #tpu.core_type<tc>} {
    %c0 = arith.constant 0 : index
    %c0_0 = arith.constant 0 : index
    %0 = vector.load %arg1[%c0, %c0_0] : memref<32x128xf32, #tpu.memory_space<vmem>>, vector<32x128xf32>
    %c0_1 = arith.constant 0 : index
    %c0_2 = arith.constant 0 : index
    %1 = vector.load %arg2[%c0_1, %c0_2] : memref<32x128xf32, #tpu.memory_space<vmem>>, vector<32x128xf32>
    %c0_3 = arith.constant 0 : index
    %c0_4 = arith.constant 0 : index
    %2 = vector.load %arg3[%c0_3, %c0_4] : memref<1x128xf32, #tpu.memory_space<vmem>>, vector<1x128xf32>
    %c0_5 = arith.constant 0 : index
    %c0_6 = arith.constant 0 : index
    %3 = vector.load %arg0[%c0_5, %c0_6] : memref<128x32xf32, #tpu.memory_space<vmem>>, vector<128x32xf32>
    %cst = arith.constant dense<0.000000e+00> : vector<128x128xf32>
    %4 = tpu.matmul %3, %0, %cst {dimension_numbers = #tpu.dot_dimension_numbers<[1], [0], [0], [1], [0, 0, 1, 1], [], []>} : vector<128x32xf32>, vector<32x128xf32>, vector<128x128xf32> -> vector<128x128xf32>
    %5 = vector.broadcast %2 : vector<1x128xf32> to vector<128x128xf32>
    %6 = arith.addf %4, %5 : vector<128x128xf32>
    %c0_7 = arith.constant 0 : index
    %c0_8 = arith.constant 0 : index
    %7 = vector.load %arg4[%c0_7, %c0_8] : memref<16x32xf32, #tpu.memory_space<vmem>>, vector<16x32xf32>
    %c0_9 = arith.constant 0 : index
    %c0_10 = arith.constant 0 : index
    %8 = vector.load %arg5[%c0_9, %c0_10] : memref<16x32xf32, #tpu.memory_space<vmem>>, vector<16x32xf32>
    %9 = vector.extract_strided_slice %6 {offsets = [0, 0], sizes = [16, 128], strides = [1, 1]} : vector<128x128xf32> to vector<16x128xf32>
    %cst_11 = arith.constant dense<0.000000e+00> : vector<16x128xf32>
    %10 = tpu.matmul %7, %1, %cst_11 {dimension_numbers = #tpu.dot_dimension_numbers<[1], [0], [0], [1], [0, 0, 1, 1], [], []>} : vector<16x32xf32>, vector<32x128xf32>, vector<16x128xf32> -> vector<16x128xf32>
    %11 = arith.addf %9, %10 : vector<16x128xf32>
    %12 = arith.negf %11 : vector<16x128xf32>
    %13 = math.exp %12 : vector<16x128xf32>
    %cst_12 = arith.constant 1.000000e+00 : f32
    %14 = vector.broadcast %cst_12 : f32 to vector<16x128xf32>
    %15 = arith.addf %14, %13 : vector<16x128xf32>
    %16 = arith.divf %14, %15 : vector<16x128xf32>
    %17 = vector.extract_strided_slice %16 {offsets = [0, 0], sizes = [16, 32], strides = [1, 1]} : vector<16x128xf32> to vector<16x32xf32>
    %18 = vector.extract_strided_slice %16 {offsets = [0, 32], sizes = [16, 32], strides = [1, 1]} : vector<16x128xf32> to vector<16x32xf32>
    %19 = vector.extract_strided_slice %16 {offsets = [0, 96], sizes = [16, 32], strides = [1, 1]} : vector<16x128xf32> to vector<16x32xf32>
    %20 = vector.extract_strided_slice %11 {offsets = [0, 64], sizes = [16, 32], strides = [1, 1]} : vector<16x128xf32> to vector<16x32xf32>
    %21 = math.tanh %20 : vector<16x32xf32>
    %22 = arith.mulf %18, %8 : vector<16x32xf32>
    %23 = arith.mulf %17, %21 : vector<16x32xf32>
    %24 = arith.addf %22, %23 : vector<16x32xf32>
    %25 = math.tanh %24 : vector<16x32xf32>
    %26 = arith.mulf %19, %25 : vector<16x32xf32>
    %27 = vector.extract_strided_slice %26 {offsets = [15, 0], sizes = [1, 32], strides = [1, 1]} : vector<16x32xf32> to vector<1x32xf32>
    %c0_13 = arith.constant 0 : index
    %c0_14 = arith.constant 0 : index
    %28 = vector.load %arg9[%c0_13, %c0_14] : memref<8x32xf32, #tpu.memory_space<vmem>>, vector<1x32xf32>
    tpu.vector_store %arg9[%c0_13, %c0_14], %27 {strides = array<i32>} : memref<8x32xf32, #tpu.memory_space<vmem>>, vector<1x32xf32>,
    %29 = vector.extract_strided_slice %6 {offsets = [16, 0], sizes = [16, 128], strides = [1, 1]} : vector<128x128xf32> to vector<16x128xf32>
    %cst_15 = arith.constant dense<0.000000e+00> : vector<16x128xf32>
    %30 = tpu.matmul %26, %1, %cst_15 {dimension_numbers = #tpu.dot_dimension_numbers<[1], [0], [0], [1], [0, 0, 1, 1], [], []>} : vector<16x32xf32>, vector<32x128xf32>, vector<16x128xf32> -> vector<16x128xf32>
    %31 = arith.addf %29, %30 : vector<16x128xf32>
    %32 = arith.negf %31 : vector<16x128xf32>
    %33 = math.exp %32 : vector<16x128xf32>
    %cst_16 = arith.constant 1.000000e+00 : f32
    %34 = vector.broadcast %cst_16 : f32 to vector<16x128xf32>
    %35 = arith.addf %34, %33 : vector<16x128xf32>
    %36 = arith.divf %34, %35 : vector<16x128xf32>
    %37 = vector.extract_strided_slice %36 {offsets = [0, 0], sizes = [16, 32], strides = [1, 1]} : vector<16x128xf32> to vector<16x32xf32>
    %38 = vector.extract_strided_slice %36 {offsets = [0, 32], sizes = [16, 32], strides = [1, 1]} : vector<16x128xf32> to vector<16x32xf32>
    %39 = vector.extract_strided_slice %36 {offsets = [0, 96], sizes = [16, 32], strides = [1, 1]} : vector<16x128xf32> to vector<16x32xf32>
    %40 = vector.extract_strided_slice %31 {offsets = [0, 64], sizes = [16, 32], strides = [1, 1]} : vector<16x128xf32> to vector<16x32xf32>
    %41 = math.tanh %40 : vector<16x32xf32>
    %42 = arith.mulf %38, %24 : vector<16x32xf32>
    %43 = arith.mulf %37, %41 : vector<16x32xf32>
    %44 = arith.addf %42, %43 : vector<16x32xf32>
    %45 = math.tanh %44 : vector<16x32xf32>
    %46 = arith.mulf %39, %45 : vector<16x32xf32>
    %47 = vector.extract_strided_slice %46 {offsets = [15, 0], sizes = [1, 32], strides = [1, 1]} : vector<16x32xf32> to vector<1x32xf32>
    %c1 = arith.constant 1 : index
    %c0_17 = arith.constant 0 : index
    %48 = vector.load %arg9[%c1, %c0_17] : memref<8x32xf32, #tpu.memory_space<vmem>>, vector<1x32xf32>
    tpu.vector_store %arg9[%c1, %c0_17], %47 {strides = array<i32>} : memref<8x32xf32, #tpu.memory_space<vmem>>, vector<1x32xf32>,
    %49 = vector.extract_strided_slice %6 {offsets = [32, 0], sizes = [16, 128], strides = [1, 1]} : vector<128x128xf32> to vector<16x128xf32>
    %cst_18 = arith.constant dense<0.000000e+00> : vector<16x128xf32>
    %50 = tpu.matmul %46, %1, %cst_18 {dimension_numbers = #tpu.dot_dimension_numbers<[1], [0], [0], [1], [0, 0, 1, 1], [], []>} : vector<16x32xf32>, vector<32x128xf32>, vector<16x128xf32> -> vector<16x128xf32>
    %51 = arith.addf %49, %50 : vector<16x128xf32>
    %52 = arith.negf %51 : vector<16x128xf32>
    %53 = math.exp %52 : vector<16x128xf32>
    %cst_19 = arith.constant 1.000000e+00 : f32
    %54 = vector.broadcast %cst_19 : f32 to vector<16x128xf32>
    %55 = arith.addf %54, %53 : vector<16x128xf32>
    %56 = arith.divf %54, %55 : vector<16x128xf32>
    %57 = vector.extract_strided_slice %56 {offsets = [0, 0], sizes = [16, 32], strides = [1, 1]} : vector<16x128xf32> to vector<16x32xf32>
    %58 = vector.extract_strided_slice %56 {offsets = [0, 32], sizes = [16, 32], strides = [1, 1]} : vector<16x128xf32> to vector<16x32xf32>
    %59 = vector.extract_strided_slice %56 {offsets = [0, 96], sizes = [16, 32], strides = [1, 1]} : vector<16x128xf32> to vector<16x32xf32>
    %60 = vector.extract_strided_slice %51 {offsets = [0, 64], sizes = [16, 32], strides = [1, 1]} : vector<16x128xf32> to vector<16x32xf32>
    %61 = math.tanh %60 : vector<16x32xf32>
    %62 = arith.mulf %58, %44 : vector<16x32xf32>
    %63 = arith.mulf %57, %61 : vector<16x32xf32>
    %64 = arith.addf %62, %63 : vector<16x32xf32>
    %65 = math.tanh %64 : vector<16x32xf32>
    %66 = arith.mulf %59, %65 : vector<16x32xf32>
    %67 = vector.extract_strided_slice %66 {offsets = [15, 0], sizes = [1, 32], strides = [1, 1]} : vector<16x32xf32> to vector<1x32xf32>
    %c2 = arith.constant 2 : index
    %c0_20 = arith.constant 0 : index
    %68 = vector.load %arg9[%c2, %c0_20] : memref<8x32xf32, #tpu.memory_space<vmem>>, vector<1x32xf32>
    tpu.vector_store %arg9[%c2, %c0_20], %67 {strides = array<i32>} : memref<8x32xf32, #tpu.memory_space<vmem>>, vector<1x32xf32>,
    %69 = vector.extract_strided_slice %6 {offsets = [48, 0], sizes = [16, 128], strides = [1, 1]} : vector<128x128xf32> to vector<16x128xf32>
    %cst_21 = arith.constant dense<0.000000e+00> : vector<16x128xf32>
    %70 = tpu.matmul %66, %1, %cst_21 {dimension_numbers = #tpu.dot_dimension_numbers<[1], [0], [0], [1], [0, 0, 1, 1], [], []>} : vector<16x32xf32>, vector<32x128xf32>, vector<16x128xf32> -> vector<16x128xf32>
    %71 = arith.addf %69, %70 : vector<16x128xf32>
    %72 = arith.negf %71 : vector<16x128xf32>
    %73 = math.exp %72 : vector<16x128xf32>
    %cst_22 = arith.constant 1.000000e+00 : f32
    %74 = vector.broadcast %cst_22 : f32 to vector<16x128xf32>
    %75 = arith.addf %74, %73 : vector<16x128xf32>
    %76 = arith.divf %74, %75 : vector<16x128xf32>
    %77 = vector.extract_strided_slice %76 {offsets = [0, 0], sizes = [16, 32], strides = [1, 1]} : vector<16x128xf32> to vector<16x32xf32>
    %78 = vector.extract_strided_slice %76 {offsets = [0, 32], sizes = [16, 32], strides = [1, 1]} : vector<16x128xf32> to vector<16x32xf32>
    %79 = vector.extract_strided_slice %76 {offsets = [0, 96], sizes = [16, 32], strides = [1, 1]} : vector<16x128xf32> to vector<16x32xf32>
    %80 = vector.extract_strided_slice %71 {offsets = [0, 64], sizes = [16, 32], strides = [1, 1]} : vector<16x128xf32> to vector<16x32xf32>
    %81 = math.tanh %80 : vector<16x32xf32>
    %82 = arith.mulf %78, %64 : vector<16x32xf32>
    %83 = arith.mulf %77, %81 : vector<16x32xf32>
    %84 = arith.addf %82, %83 : vector<16x32xf32>
    %85 = math.tanh %84 : vector<16x32xf32>
    %86 = arith.mulf %79, %85 : vector<16x32xf32>
    %87 = vector.extract_strided_slice %86 {offsets = [15, 0], sizes = [1, 32], strides = [1, 1]} : vector<16x32xf32> to vector<1x32xf32>
    %c3 = arith.constant 3 : index
    %c0_23 = arith.constant 0 : index
    %88 = vector.load %arg9[%c3, %c0_23] : memref<8x32xf32, #tpu.memory_space<vmem>>, vector<1x32xf32>
    tpu.vector_store %arg9[%c3, %c0_23], %87 {strides = array<i32>} : memref<8x32xf32, #tpu.memory_space<vmem>>, vector<1x32xf32>,
    %89 = vector.extract_strided_slice %6 {offsets = [64, 0], sizes = [16, 128], strides = [1, 1]} : vector<128x128xf32> to vector<16x128xf32>
    %cst_24 = arith.constant dense<0.000000e+00> : vector<16x128xf32>
    %90 = tpu.matmul %86, %1, %cst_24 {dimension_numbers = #tpu.dot_dimension_numbers<[1], [0], [0], [1], [0, 0, 1, 1], [], []>} : vector<16x32xf32>, vector<32x128xf32>, vector<16x128xf32> -> vector<16x128xf32>
    %91 = arith.addf %89, %90 : vector<16x128xf32>
    %92 = arith.negf %91 : vector<16x128xf32>
    %93 = math.exp %92 : vector<16x128xf32>
    %cst_25 = arith.constant 1.000000e+00 : f32
    %94 = vector.broadcast %cst_25 : f32 to vector<16x128xf32>
    %95 = arith.addf %94, %93 : vector<16x128xf32>
    %96 = arith.divf %94, %95 : vector<16x128xf32>
    %97 = vector.extract_strided_slice %96 {offsets = [0, 0], sizes = [16, 32], strides = [1, 1]} : vector<16x128xf32> to vector<16x32xf32>
    %98 = vector.extract_strided_slice %96 {offsets = [0, 32], sizes = [16, 32], strides = [1, 1]} : vector<16x128xf32> to vector<16x32xf32>
    %99 = vector.extract_strided_slice %96 {offsets = [0, 96], sizes = [16, 32], strides = [1, 1]} : vector<16x128xf32> to vector<16x32xf32>
    %100 = vector.extract_strided_slice %91 {offsets = [0, 64], sizes = [16, 32], strides = [1, 1]} : vector<16x128xf32> to vector<16x32xf32>
    %101 = math.tanh %100 : vector<16x32xf32>
    %102 = arith.mulf %98, %84 : vector<16x32xf32>
    %103 = arith.mulf %97, %101 : vector<16x32xf32>
    %104 = arith.addf %102, %103 : vector<16x32xf32>
    %105 = math.tanh %104 : vector<16x32xf32>
    %106 = arith.mulf %99, %105 : vector<16x32xf32>
    %107 = vector.extract_strided_slice %106 {offsets = [15, 0], sizes = [1, 32], strides = [1, 1]} : vector<16x32xf32> to vector<1x32xf32>
    %c4 = arith.constant 4 : index
    %c0_26 = arith.constant 0 : index
    %108 = vector.load %arg9[%c4, %c0_26] : memref<8x32xf32, #tpu.memory_space<vmem>>, vector<1x32xf32>
    tpu.vector_store %arg9[%c4, %c0_26], %107 {strides = array<i32>} : memref<8x32xf32, #tpu.memory_space<vmem>>, vector<1x32xf32>,
    %109 = vector.extract_strided_slice %6 {offsets = [80, 0], sizes = [16, 128], strides = [1, 1]} : vector<128x128xf32> to vector<16x128xf32>
    %cst_27 = arith.constant dense<0.000000e+00> : vector<16x128xf32>
    %110 = tpu.matmul %106, %1, %cst_27 {dimension_numbers = #tpu.dot_dimension_numbers<[1], [0], [0], [1], [0, 0, 1, 1], [], []>} : vector<16x32xf32>, vector<32x128xf32>, vector<16x128xf32> -> vector<16x128xf32>
    %111 = arith.addf %109, %110 : vector<16x128xf32>
    %112 = arith.negf %111 : vector<16x128xf32>
    %113 = math.exp %112 : vector<16x128xf32>
    %cst_28 = arith.constant 1.000000e+00 : f32
    %114 = vector.broadcast %cst_28 : f32 to vector<16x128xf32>
    %115 = arith.addf %114, %113 : vector<16x128xf32>
    %116 = arith.divf %114, %115 : vector<16x128xf32>
    %117 = vector.extract_strided_slice %116 {offsets = [0, 0], sizes = [16, 32], strides = [1, 1]} : vector<16x128xf32> to vector<16x32xf32>
    %118 = vector.extract_strided_slice %116 {offsets = [0, 32], sizes = [16, 32], strides = [1, 1]} : vector<16x128xf32> to vector<16x32xf32>
    %119 = vector.extract_strided_slice %116 {offsets = [0, 96], sizes = [16, 32], strides = [1, 1]} : vector<16x128xf32> to vector<16x32xf32>
    %120 = vector.extract_strided_slice %111 {offsets = [0, 64], sizes = [16, 32], strides = [1, 1]} : vector<16x128xf32> to vector<16x32xf32>
    %121 = math.tanh %120 : vector<16x32xf32>
    %122 = arith.mulf %118, %104 : vector<16x32xf32>
    %123 = arith.mulf %117, %121 : vector<16x32xf32>
    %124 = arith.addf %122, %123 : vector<16x32xf32>
    %125 = math.tanh %124 : vector<16x32xf32>
    %126 = arith.mulf %119, %125 : vector<16x32xf32>
    %127 = vector.extract_strided_slice %126 {offsets = [15, 0], sizes = [1, 32], strides = [1, 1]} : vector<16x32xf32> to vector<1x32xf32>
    %c5 = arith.constant 5 : index
    %c0_29 = arith.constant 0 : index
    %128 = vector.load %arg9[%c5, %c0_29] : memref<8x32xf32, #tpu.memory_space<vmem>>, vector<1x32xf32>
    tpu.vector_store %arg9[%c5, %c0_29], %127 {strides = array<i32>} : memref<8x32xf32, #tpu.memory_space<vmem>>, vector<1x32xf32>,
    %129 = vector.extract_strided_slice %6 {offsets = [96, 0], sizes = [16, 128], strides = [1, 1]} : vector<128x128xf32> to vector<16x128xf32>
    %cst_30 = arith.constant dense<0.000000e+00> : vector<16x128xf32>
    %130 = tpu.matmul %126, %1, %cst_30 {dimension_numbers = #tpu.dot_dimension_numbers<[1], [0], [0], [1], [0, 0, 1, 1], [], []>} : vector<16x32xf32>, vector<32x128xf32>, vector<16x128xf32> -> vector<16x128xf32>
    %131 = arith.addf %129, %130 : vector<16x128xf32>
    %132 = arith.negf %131 : vector<16x128xf32>
    %133 = math.exp %132 : vector<16x128xf32>
    %cst_31 = arith.constant 1.000000e+00 : f32
    %134 = vector.broadcast %cst_31 : f32 to vector<16x128xf32>
    %135 = arith.addf %134, %133 : vector<16x128xf32>
    %136 = arith.divf %134, %135 : vector<16x128xf32>
    %137 = vector.extract_strided_slice %136 {offsets = [0, 0], sizes = [16, 32], strides = [1, 1]} : vector<16x128xf32> to vector<16x32xf32>
    %138 = vector.extract_strided_slice %136 {offsets = [0, 32], sizes = [16, 32], strides = [1, 1]} : vector<16x128xf32> to vector<16x32xf32>
    %139 = vector.extract_strided_slice %136 {offsets = [0, 96], sizes = [16, 32], strides = [1, 1]} : vector<16x128xf32> to vector<16x32xf32>
    %140 = vector.extract_strided_slice %131 {offsets = [0, 64], sizes = [16, 32], strides = [1, 1]} : vector<16x128xf32> to vector<16x32xf32>
    %141 = math.tanh %140 : vector<16x32xf32>
    %142 = arith.mulf %138, %124 : vector<16x32xf32>
    %143 = arith.mulf %137, %141 : vector<16x32xf32>
    %144 = arith.addf %142, %143 : vector<16x32xf32>
    %145 = math.tanh %144 : vector<16x32xf32>
    %146 = arith.mulf %139, %145 : vector<16x32xf32>
    %147 = vector.extract_strided_slice %146 {offsets = [15, 0], sizes = [1, 32], strides = [1, 1]} : vector<16x32xf32> to vector<1x32xf32>
    %c6 = arith.constant 6 : index
    %c0_32 = arith.constant 0 : index
    %148 = vector.load %arg9[%c6, %c0_32] : memref<8x32xf32, #tpu.memory_space<vmem>>, vector<1x32xf32>
    tpu.vector_store %arg9[%c6, %c0_32], %147 {strides = array<i32>} : memref<8x32xf32, #tpu.memory_space<vmem>>, vector<1x32xf32>,
    %149 = vector.extract_strided_slice %6 {offsets = [112, 0], sizes = [16, 128], strides = [1, 1]} : vector<128x128xf32> to vector<16x128xf32>
    %cst_33 = arith.constant dense<0.000000e+00> : vector<16x128xf32>
    %150 = tpu.matmul %146, %1, %cst_33 {dimension_numbers = #tpu.dot_dimension_numbers<[1], [0], [0], [1], [0, 0, 1, 1], [], []>} : vector<16x32xf32>, vector<32x128xf32>, vector<16x128xf32> -> vector<16x128xf32>
    %151 = arith.addf %149, %150 : vector<16x128xf32>
    %152 = arith.negf %151 : vector<16x128xf32>
    %153 = math.exp %152 : vector<16x128xf32>
    %cst_34 = arith.constant 1.000000e+00 : f32
    %154 = vector.broadcast %cst_34 : f32 to vector<16x128xf32>
    %155 = arith.addf %154, %153 : vector<16x128xf32>
    %156 = arith.divf %154, %155 : vector<16x128xf32>
    %157 = vector.extract_strided_slice %156 {offsets = [0, 0], sizes = [16, 32], strides = [1, 1]} : vector<16x128xf32> to vector<16x32xf32>
    %158 = vector.extract_strided_slice %156 {offsets = [0, 32], sizes = [16, 32], strides = [1, 1]} : vector<16x128xf32> to vector<16x32xf32>
    %159 = vector.extract_strided_slice %156 {offsets = [0, 96], sizes = [16, 32], strides = [1, 1]} : vector<16x128xf32> to vector<16x32xf32>
    %160 = vector.extract_strided_slice %151 {offsets = [0, 64], sizes = [16, 32], strides = [1, 1]} : vector<16x128xf32> to vector<16x32xf32>
    %161 = math.tanh %160 : vector<16x32xf32>
    %162 = arith.mulf %158, %144 : vector<16x32xf32>
    %163 = arith.mulf %157, %161 : vector<16x32xf32>
    %164 = arith.addf %162, %163 : vector<16x32xf32>
    %165 = math.tanh %164 : vector<16x32xf32>
    %166 = arith.mulf %159, %165 : vector<16x32xf32>
    %167 = vector.extract_strided_slice %166 {offsets = [15, 0], sizes = [1, 32], strides = [1, 1]} : vector<16x32xf32> to vector<1x32xf32>
    %c7 = arith.constant 7 : index
    %c0_35 = arith.constant 0 : index
    %168 = vector.load %arg9[%c7, %c0_35] : memref<8x32xf32, #tpu.memory_space<vmem>>, vector<1x32xf32>
    tpu.vector_store %arg9[%c7, %c0_35], %167 {strides = array<i32>} : memref<8x32xf32, #tpu.memory_space<vmem>>, vector<1x32xf32>,
    %c0_36 = arith.constant 0 : index
    %c0_37 = arith.constant 0 : index
    %169 = vector.load %arg9[%c0_36, %c0_37] : memref<8x32xf32, #tpu.memory_space<vmem>>, vector<8x32xf32>
    %c0_38 = arith.constant 0 : index
    %c0_39 = arith.constant 0 : index
    %170 = vector.load %arg6[%c0_38, %c0_39] : memref<32x1xf32, #tpu.memory_space<vmem>>, vector<32x1xf32>
    %cst_40 = arith.constant dense<0.000000e+00> : vector<8x1xf32>
    %171 = tpu.matmul %169, %170, %cst_40 {dimension_numbers = #tpu.dot_dimension_numbers<[1], [0], [0], [1], [0, 0, 1, 1], [], []>} : vector<8x32xf32>, vector<32x1xf32>, vector<8x1xf32> -> vector<8x1xf32>
    %c0_41 = arith.constant 0 : index
    %c0_42 = arith.constant 0 : index
    %172 = vector.load %arg7[%c0_41, %c0_42] : memref<1x1xf32, #tpu.memory_space<vmem>>, vector<1x1xf32>
    %173 = vector.broadcast %172 : vector<1x1xf32> to vector<8x1xf32>
    %174 = arith.addf %171, %173 : vector<8x1xf32>
    %c0_43 = arith.constant 0 : index
    %c0_44 = arith.constant 0 : index
    %175 = vector.load %arg8[%c0_43, %c0_44] : memref<8x1xf32, #tpu.memory_space<vmem>>, vector<8x1xf32>
    tpu.vector_store %arg8[%c0_43, %c0_44], %174 {strides = array<i32>} : memref<8x1xf32, #tpu.memory_space<vmem>>, vector<8x1xf32>,
    return
  }
}

</mosaic_0001>

<llo_original>
// kernel: lstm_forward.1
$region0: #{lstm_forward.1}
  #allocation0 [shape = 'u32[]', space=smem, size = 0x4, offset = 0x4, fixed_abs, tag = 'smem constant byte address 0x4 - core index']
  #allocation1 [shape = 'u32[144,128]{1,0:T(1,128)}', space=vmem, size = 0x12000, scoped, tag = 'internal scratch']
  #allocation2 [shape = 'f32[8,32]{1,0:T(8,128)}', space=vmem, size = 0x1000, scoped, tag = 'scratch operand']
  #allocation3 [shape = 'f32[1,1]{1,0:T(1,128)S(1)}', space=vmem, size = 0x200, scoped, tag = 'scoped memory for lstm_forward.1']
  %s0 = inlined_call_operand.hbm [shape: f32[128,32], index: 0, kind: input, shape index: {}]
  %s1 = inlined_call_operand.vmem [shape: f32[32,128], index: 1, kind: input, shape index: {}]
  %s2 = inlined_call_operand.hbm [shape: f32[32,128], index: 2, kind: input, shape index: {}]
  %s3 = inlined_call_operand.vmem [shape: f32[1,128], index: 3, kind: input, shape index: {}]
  %s4 = inlined_call_operand.vmem [shape: f32[16,32], index: 4, kind: input, shape index: {}]
  %s5 = inlined_call_operand.hbm [shape: f32[16,32], index: 5, kind: input, shape index: {}]
  %s6 = inlined_call_operand.vmem [shape: f32[32,1], index: 6, kind: input, shape index: {}]
  %s7 = inlined_call_operand.<no memory space> [shape: f32[1,1], index: 7, kind: input, shape index: {}]
  %s8 = inlined_call_operand.vmem [shape: f32[8,1], index: 8, kind: output, shape index: {}]
  %s9 = sld [smem:[#allocation0]]
  $region54: #{lstm_forward.1} parent=0
    _
  %s11 = ssub.s32 1, %s9
  %s12 = scalar_select 0, %s11, %s9
  %v13 = vstv %s7
  %14 = vst [vmem:[#allocation3] sm:$0x1] %v13
  $region1: #{lstm_forward.1} parent=0
    #allocation4 [shape = 'u8[65536]{0}', space=vmem, size = 0x10000, scoped, tag = 'input window, operand 0, single buffered']
    #allocation5 [shape = 's32[1]{0}', space=sflag, size = 0x4, scoped, tag = 'scoped memory for lstm_forward.1']
    #allocation6 [shape = 'u8[16384]{0}', space=vmem, size = 0x4000, scoped, tag = 'input window, operand 2, single buffered']
    #allocation7 [shape = 's32[1]{0}', space=sflag, size = 0x4, scoped, tag = 'scoped memory for lstm_forward.1']
    #allocation8 [shape = 'u8[8192]{0}', space=vmem, size = 0x2000, scoped, tag = 'input window, operand 5, single buffered']
    %15 = vsyncpa [#allocation5], 0
    %16 = vsyncpa [#allocation7], 0
    // Predicated region
    $region2: #{lstm_forward.1} parent=1 // pred_check
      _
    $region3: #{lstm_forward.1} parent=1 // pred_check_branch
      %18 = sbr.rel (0) target = $region5
    $region4: #{lstm_forward.1} parent=1 // pred_region
      %s20 = ssub.s32 2048, 2048
      %21 = vsyncadd [#allocation5], %s20
      %s22 = sshll.u32 [#allocation4], 4
      %s23 = int_to_ptr.vmem [resolvable:$true] %s22
      %28 = dma.hbm_to_vmem [thread:$0]  %s0, 2048, %s23, [#allocation5], 128, 128, 8
    $region5: #{lstm_forward.1} parent=1 // pred_fallthru
      _
    // Predicated region
    $region6: #{lstm_forward.1} parent=1 // pred_check
      _
    $region7: #{lstm_forward.1} parent=1 // pred_check_branch
      %30 = sbr.rel (0) target = $region9
    $region8: #{lstm_forward.1} parent=1 // pred_region
      _
    $region9: #{lstm_forward.1} parent=1 // pred_fallthru
      _
    // Predicated region
    $region10: #{lstm_forward.1} parent=1 // pred_check
      _
    $region11: #{lstm_forward.1} parent=1 // pred_check_branch
      %32 = sbr.rel (0) target = $region13
    $region12: #{lstm_forward.1} parent=1 // pred_region
      %s34 = ssub.s32 512, 512
      %35 = vsyncadd [#allocation7], %s34
      %s36 = sshll.u32 [#allocation6], 4
      %s37 = int_to_ptr.vmem [resolvable:$true] %s36
      %42 = dma.hbm_to_vmem [thread:$0]  %s2, 512, %s37, [#allocation7], 128, 128, 8
    $region13: #{lstm_forward.1} parent=1 // pred_fallthru
      _
    // Predicated region
    $region14: #{lstm_forward.1} parent=1 // pred_check
      _
    $region15: #{lstm_forward.1} parent=1 // pred_check_branch
      %44 = sbr.rel (0) target = $region17
    $region16: #{lstm_forward.1} parent=1 // pred_region
      _
    $region17: #{lstm_forward.1} parent=1 // pred_fallthru
      _
    // Predicated region
    $region18: #{lstm_forward.1} parent=1 // pred_check
      _
    $region19: #{lstm_forward.1} parent=1 // pred_check_branch
      %46 = sbr.rel (0) target = $region21
    $region20: #{lstm_forward.1} parent=1 // pred_region
      _
    $region21: #{lstm_forward.1} parent=1 // pred_fallthru
      _
    // Predicated region
    $region22: #{lstm_forward.1} parent=1 // pred_check
      _
    $region23: #{lstm_forward.1} parent=1 // pred_check_branch
      %48 = sbr.rel (0) target = $region25
    $region24: #{lstm_forward.1} parent=1 // pred_region
      %s50 = ssub.s32 256, 256
      %51 = vsyncadd [#allocation7], %s50
      %s52 = sshll.u32 [#allocation8], 4
      %s53 = int_to_ptr.vmem [resolvable:$true] %s52
      %58 = dma.hbm_to_vmem [thread:$0]  %s5, 256, %s53, [#allocation7], 128, 128, 8
    $region25: #{lstm_forward.1} parent=1 // pred_fallthru
      _
    // Predicated region
    $region26: #{lstm_forward.1} parent=1 // pred_check
      _
    $region27: #{lstm_forward.1} parent=1 // pred_check_branch
      %60 = sbr.rel (0) target = $region29
    $region28: #{lstm_forward.1} parent=1 // pred_region
      _
    $region29: #{lstm_forward.1} parent=1 // pred_fallthru
      _
    // Predicated region
    $region30: #{lstm_forward.1} parent=1 // pred_check
      _
    $region31: #{lstm_forward.1} parent=1 // pred_check_branch
      %62 = sbr.rel (0) target = $region33
    $region32: #{lstm_forward.1} parent=1 // pred_region
      _
    $region33: #{lstm_forward.1} parent=1 // pred_fallthru
      _
    // Predicated region
    $region34: #{lstm_forward.1} parent=1 // pred_check
      _
    $region35: #{lstm_forward.1} parent=1 // pred_check_branch
      %64 = sbr.rel (0) target = $region37
    $region36: #{lstm_forward.1} parent=1 // pred_region
      %65 = dma.done [#allocation5], 2048
    $region37: #{lstm_forward.1} parent=1 // pred_fallthru
      _
    // Predicated region
    $region38: #{lstm_forward.1} parent=1 // pred_check
      _
    $region39: #{lstm_forward.1} parent=1 // pred_check_branch
      %67 = sbr.rel (0) target = $region41
    $region40: #{lstm_forward.1} parent=1 // pred_region
      %68 = dma.done [#allocation7], 512
    $region41: #{lstm_forward.1} parent=1 // pred_fallthru
      _
    // Predicated region
    $region42: #{lstm_forward.1} parent=1 // pred_check
      _
    $region43: #{lstm_forward.1} parent=1 // pred_check_branch
      %70 = sbr.rel (0) target = $region45
    $region44: #{lstm_forward.1} parent=1 // pred_region
      %71 = dma.done [#allocation7], 256
    $region45: #{lstm_forward.1} parent=1 // pred_fallthru
      _
    %v72 = vld [vmem:[%s1] sm:$0xff]
    %v73 = vld [vmem:[%s1 + $0x8] sm:$0xff]
    %v74 = vld [vmem:[%s1 + $0x10] sm:$0xff]
    %v75 = vld [vmem:[%s1 + $0x18] sm:$0xff]
    %v76 = vld [vmem:[#allocation6] sm:$0xff]
    %v77 = vld [vmem:[#allocation6 + $0x8] sm:$0xff]
    %v78 = vld [vmem:[#allocation6 + $0x10] sm:$0xff]
    %v79 = vld [vmem:[#allocation6 + $0x18] sm:$0xff]
    %v80 = vld [vmem:[%s3] sm:$0x1]
    %v81 = vld [vmem:[#allocation4] sm:$0xff]
    %v82 = vld [vmem:[#allocation4 + $0x8] sm:$0xff]
    %v83 = vld [vmem:[#allocation4 + $0x10] sm:$0xff]
    %v84 = vld [vmem:[#allocation4 + $0x18] sm:$0xff]
    %v85 = vld [vmem:[#allocation4 + $0x20] sm:$0xff]
    %v86 = vld [vmem:[#allocation4 + $0x28] sm:$0xff]
    %v87 = vld [vmem:[#allocation4 + $0x30] sm:$0xff]
    %v88 = vld [vmem:[#allocation4 + $0x38] sm:$0xff]
    %v89 = vld [vmem:[#allocation4 + $0x40] sm:$0xff]
    %v90 = vld [vmem:[#allocation4 + $0x48] sm:$0xff]
    %v91 = vld [vmem:[#allocation4 + $0x50] sm:$0xff]
    %v92 = vld [vmem:[#allocation4 + $0x58] sm:$0xff]
    %v93 = vld [vmem:[#allocation4 + $0x60] sm:$0xff]
    %v94 = vld [vmem:[#allocation4 + $0x68] sm:$0xff]
    %v95 = vld [vmem:[#allocation4 + $0x70] sm:$0xff]
    %v96 = vld [vmem:[#allocation4 + $0x78] sm:$0xff]
    %v98 = vlaneseq
    %v99 = vshrl.u32 %v98, 7
    %v100 = vsub.s32 0, %v99
    %v101 = vrot.slane %v80, %v100
    %vm103 = vcmask 261120
    %v105 = vsel %vm103, %v81, 0
    %v108 = vsel %vm103, %v82, 0
    %v111 = vsel %vm103, %v83, 0
    %v114 = vsel %vm103, %v84, 0
    %v117 = vsel %vm103, %v85, 0
    %v120 = vsel %vm103, %v86, 0
    %v123 = vsel %vm103, %v87, 0
    %v126 = vsel %vm103, %v88, 0
    %v129 = vsel %vm103, %v89, 0
    %v132 = vsel %vm103, %v90, 0
    %v135 = vsel %vm103, %v91, 0
    %v138 = vsel %vm103, %v92, 0
    %v141 = vsel %vm103, %v93, 0
    %v144 = vsel %vm103, %v94, 0
    %v147 = vsel %vm103, %v95, 0
    %v150 = vsel %vm103, %v96, 0
    %152 = vmatprep.subr.mxu0 0.0
    %153 = vmatpush1.msra.mxu0 %v72
    %154 = vmatprep.subr.mxu0 0.0
    %155 = vmatpush1.msra.mxu0 %v73
    %156 = vmatprep.subr.mxu0 0.0
    %157 = vmatpush1.msra.mxu0 %v74
    %158 = vmatprep.subr.mxu0 0.0
    %159 = vmatpush1.msra.mxu0 %v75
    %160 = vmatprep.subr.mxu0 0.0
    %161 = vmatpush1.msra.mxu0 0.0
    %162 = vmatprep.subr.mxu0 0.0
    %163 = vmatpush1.msra.mxu0 0.0
    %164 = vmatprep.subr.mxu0 0.0
    %165 = vmatpush1.msra.mxu0 0.0
    %166 = vmatprep.subr.mxu0 0.0
    %167 = vmatpush1.msra.mxu0 0.0
    %168 = vmatprep.subr.mxu0 0.0
    %169 = vmatpush1.msra.mxu0 0.0
    %170 = vmatprep.subr.mxu0 0.0
    %171 = vmatpush1.msra.mxu0 0.0
    %172 = vmatprep.subr.mxu0 0.0
    %173 = vmatpush1.msra.mxu0 0.0
    %174 = vmatprep.subr.mxu0 0.0
    %175 = vmatpush1.msra.mxu0 0.0
    %176 = vmatprep.subr.mxu0 0.0
    %177 = vmatpush1.msra.mxu0 0.0
    %178 = vmatprep.subr.mxu0 0.0
    %179 = vmatpush1.msra.mxu0 0.0
    %180 = vmatprep.subr.mxu0 0.0
    %181 = vmatpush1.msra.mxu0 0.0
    %182 = vmatprep.subr.mxu0 0.0
    %183 = vmatpush1.msra.mxu0 0.0
    %184 = vmatprep.subr.mxu0 0.0
    %185 = vmatpush1.msra.mxu0 0.0
    %186 = vmatprep.subr.mxu0 0.0
    %187 = vmatpush1.msra.mxu0 0.0
    %188 = vmatprep.subr.mxu0 0.0
    %189 = vmatpush1.msra.mxu0 0.0
    %190 = vmatprep.subr.mxu0 0.0
    %191 = vmatpush1.msra.mxu0 0.0
    %192 = vmatprep.subr.mxu0 0.0
    %193 = vmatpush1.msra.mxu0 0.0
    %194 = vmatprep.subr.mxu0 0.0
    %195 = vmatpush1.msra.mxu0 0.0
    %196 = vmatprep.subr.mxu0 0.0
    %197 = vmatpush1.msra.mxu0 0.0
    %198 = vmatprep.subr.mxu0 0.0
    %199 = vmatpush1.msra.mxu0 0.0
    %200 = vmatprep.subr.mxu0 0.0
    %201 = vmatpush1.msra.mxu0 0.0
    %202 = vmatprep.subr.mxu0 0.0
    %203 = vmatpush1.msra.mxu0 0.0
    %204 = vmatprep.subr.mxu0 0.0
    %205 = vmatpush1.msra.mxu0 0.0
    %206 = vmatprep.subr.mxu0 0.0
    %207 = vmatpush1.msra.mxu0 0.0
    %208 = vmatprep.subr.mxu0 0.0
    %209 = vmatpush1.msra.mxu0 0.0
    %210 = vmatprep.subr.mxu0 0.0
    %211 = vmatpush1.msra.mxu0 0.0
    %212 = vmatprep.subr.mxu0 0.0
    %213 = vmatpush1.msra.mxu0 0.0
    %214 = vmatprep.subr.mxu0 0.0
    %215 = vmatpush1.msra.mxu0 0.0
    %216 = vmatprep.mubr.f32.mxu0 0.0
    %217 = vmatmul.mubr.f32.gmra.mrb[0].mxu0 %v105
    %v218 = vpop.f32.mrb[0].mxu0
    %v219 = vadd.f32 %v101, %v218
    %v220 = vpop.f32.mrb[0].mxu0
    %221 = vmatprep.mubr.f32.mxu0 0.0
    %222 = vmatmul.mubr.f32.gmra.mrb[0].mxu0 %v108
    %v223 = vpop.f32.mrb[0].mxu0
    %v224 = vadd.f32 %v101, %v223
    %v225 = vpop.f32.mrb[0].mxu0
    %226 = vmatprep.mubr.f32.mxu0 0.0
    %227 = vmatmul.mubr.f32.gmra.mrb[0].mxu0 %v111
    %v228 = vpop.f32.mrb[0].mxu0
    %v229 = vadd.f32 %v101, %v228
    %v230 = vpop.f32.mrb[0].mxu0
    %231 = vmatprep.mubr.f32.mxu0 0.0
    %232 = vmatmul.mubr.f32.gmra.mrb[0].mxu0 %v114
    %v233 = vpop.f32.mrb[0].mxu0
    %v234 = vadd.f32 %v101, %v233
    %v235 = vpop.f32.mrb[0].mxu0
    %236 = vmatprep.mubr.f32.mxu0 0.0
    %237 = vmatmul.mubr.f32.gmra.mrb[0].mxu0 %v117
    %v238 = vpop.f32.mrb[0].mxu0
    %v239 = vadd.f32 %v101, %v238
    %v240 = vpop.f32.mrb[0].mxu0
    %241 = vmatprep.mubr.f32.mxu0 0.0
    %242 = vmatmul.mubr.f32.gmra.mrb[0].mxu0 %v120
    %v243 = vpop.f32.mrb[0].mxu0
    %v244 = vadd.f32 %v101, %v243
    %v245 = vpop.f32.mrb[0].mxu0
    %246 = vmatprep.mubr.f32.mxu0 0.0
    %247 = vmatmul.mubr.f32.gmra.mrb[0].mxu0 %v123
    %v248 = vpop.f32.mrb[0].mxu0
    %v249 = vadd.f32 %v101, %v248
    %v250 = vpop.f32.mrb[0].mxu0
    %251 = vmatprep.mubr.f32.mxu0 0.0
    %252 = vmatmul.mubr.f32.gmra.mrb[0].mxu0 %v126
    %v253 = vpop.f32.mrb[0].mxu0
    %v254 = vadd.f32 %v101, %v253
    %v255 = vpop.f32.mrb[0].mxu0
    %256 = vmatprep.mubr.f32.mxu0 0.0
    %257 = vmatmul.mubr.f32.gmra.mrb[0].mxu0 %v129
    %v258 = vpop.f32.mrb[0].mxu0
    %v259 = vadd.f32 %v101, %v258
    %v260 = vpop.f32.mrb[0].mxu0
    %261 = vmatprep.mubr.f32.mxu0 0.0
    %262 = vmatmul.mubr.f32.gmra.mrb[0].mxu0 %v132
    %v263 = vpop.f32.mrb[0].mxu0
    %v264 = vadd.f32 %v101, %v263
    %v265 = vpop.f32.mrb[0].mxu0
    %266 = vmatprep.mubr.f32.mxu0 0.0
    %267 = vmatmul.mubr.f32.gmra.mrb[0].mxu0 %v135
    %v268 = vpop.f32.mrb[0].mxu0
    %v269 = vadd.f32 %v101, %v268
    %v270 = vpop.f32.mrb[0].mxu0
    %271 = vmatprep.mubr.f32.mxu0 0.0
    %272 = vmatmul.mubr.f32.gmra.mrb[0].mxu0 %v138
    %v273 = vpop.f32.mrb[0].mxu0
    %v274 = vadd.f32 %v101, %v273
    %v275 = vpop.f32.mrb[0].mxu0
    %276 = vmatprep.mubr.f32.mxu0 0.0
    %277 = vmatmul.mubr.f32.gmra.mrb[0].mxu0 %v141
    %v278 = vpop.f32.mrb[0].mxu0
    %v279 = vadd.f32 %v101, %v278
    %v280 = vpop.f32.mrb[0].mxu0
    %281 = vmatprep.mubr.f32.mxu0 0.0
    %282 = vmatmul.mubr.f32.gmra.mrb[0].mxu0 %v144
    %v283 = vpop.f32.mrb[0].mxu0
    %v284 = vadd.f32 %v101, %v283
    %v285 = vpop.f32.mrb[0].mxu0
    %286 = vmatprep.mubr.f32.mxu0 0.0
    %287 = vmatmul.mubr.f32.gmra.mrb[0].mxu0 %v147
    %v288 = vpop.f32.mrb[0].mxu0
    %v289 = vpop.f32.mrb[0].mxu0
    %290 = vmatprep.mubr.f32.mxu0 0.0
    %291 = vmatmul.mubr.f32.gmra.mrb[0].mxu0 %v150
    %v292 = vpop.f32.mrb[0].mxu0
    %v293 = vadd.f32 %v101, %v292
    %v294 = vpop.f32.mrb[0].mxu0
    %295 = vdwg.mxu0
    %v296 = vld [vmem:[%s4] sm:$0xff]
    %v297 = vld [vmem:[%s4 + $0x8] sm:$0xff]
    %v298 = vld [vmem:[#allocation8] sm:$0xff]
    %v299 = vld [vmem:[#allocation8 + $0x8] sm:$0xff]
    %v301 = vsel %vm103, %v296, 0
    %v304 = vsel %vm103, %v297, 0
    %306 = vmatprep.subr.mxu0 0.0
    %307 = vmatpush1.msra.mxu0 %v76
    %308 = vmatprep.subr.mxu0 0.0
    %309 = vmatpush1.msra.mxu0 %v77
    %310 = vmatprep.subr.mxu0 0.0
    %311 = vmatpush1.msra.mxu0 %v78
    %312 = vmatprep.subr.mxu0 0.0
    %313 = vmatpush1.msra.mxu0 %v79
    %314 = vmatprep.subr.mxu0 0.0
    %315 = vmatpush1.msra.mxu0 0.0
    %316 = vmatprep.subr.mxu0 0.0
    %317 = vmatpush1.msra.mxu0 0.0
    %318 = vmatprep.subr.mxu0 0.0
    %319 = vmatpush1.msra.mxu0 0.0
    %320 = vmatprep.subr.mxu0 0.0
    %321 = vmatpush1.msra.mxu0 0.0
    %322 = vmatprep.subr.mxu0 0.0
    %323 = vmatpush1.msra.mxu0 0.0
    %324 = vmatprep.subr.mxu0 0.0
    %325 = vmatpush1.msra.mxu0 0.0
    %326 = vmatprep.subr.mxu0 0.0
    %327 = vmatpush1.msra.mxu0 0.0
    %328 = vmatprep.subr.mxu0 0.0
    %329 = vmatpush1.msra.mxu0 0.0
    %330 = vmatprep.subr.mxu0 0.0
    %331 = vmatpush1.msra.mxu0 0.0
    %332 = vmatprep.subr.mxu0 0.0
    %333 = vmatpush1.msra.mxu0 0.0
    %334 = vmatprep.subr.mxu0 0.0
    %335 = vmatpush1.msra.mxu0 0.0
    %336 = vmatprep.subr.mxu0 0.0
    %337 = vmatpush1.msra.mxu0 0.0
    %338 = vmatprep.subr.mxu0 0.0
    %339 = vmatpush1.msra.mxu0 0.0
    %340 = vmatprep.subr.mxu0 0.0
    %341 = vmatpush1.msra.mxu0 0.0
    %342 = vmatprep.subr.mxu0 0.0
    %343 = vmatpush1.msra.mxu0 0.0
    %344 = vmatprep.subr.mxu0 0.0
    %345 = vmatpush1.msra.mxu0 0.0
    %346 = vmatprep.subr.mxu0 0.0
    %347 = vmatpush1.msra.mxu0 0.0
    %348 = vmatprep.subr.mxu0 0.0
    %349 = vmatpush1.msra.mxu0 0.0
    %350 = vmatprep.subr.mxu0 0.0
    %351 = vmatpush1.msra.mxu0 0.0
    %352 = vmatprep.subr.mxu0 0.0
    %353 = vmatpush1.msra.mxu0 0.0
    %354 = vmatprep.subr.mxu0 0.0
    %355 = vmatpush1.msra.mxu0 0.0
    %356 = vmatprep.subr.mxu0 0.0
    %357 = vmatpush1.msra.mxu0 0.0
    %358 = vmatprep.subr.mxu0 0.0
    %359 = vmatpush1.msra.mxu0 0.0
    %360 = vmatprep.subr.mxu0 0.0
    %361 = vmatpush1.msra.mxu0 0.0
    %362 = vmatprep.subr.mxu0 0.0
    %363 = vmatpush1.msra.mxu0 0.0
    %364 = vmatprep.subr.mxu0 0.0
    %365 = vmatpush1.msra.mxu0 0.0
    %366 = vmatprep.subr.mxu0 0.0
    %367 = vmatpush1.msra.mxu0 0.0
    %368 = vmatprep.subr.mxu0 0.0
    %369 = vmatpush1.msra.mxu0 0.0
    %370 = vmatprep.mubr.f32.mxu0 0.0
    %371 = vmatmul.mubr.f32.gmra.mrb[0].mxu0 %v301
    %v372 = vpop.f32.mrb[0].mxu0
    %v373 = vadd.f32 0.0, %v372
    %v374 = vpop.f32.mrb[0].mxu0
    %375 = vmatprep.mubr.f32.mxu0 0.0
    %376 = vmatmul.mubr.f32.gmra.mrb[0].mxu0 %v304
    %v377 = vpop.f32.mrb[0].mxu0
    %v378 = vadd.f32 0.0, %v377
    %v379 = vpop.f32.mrb[0].mxu0
    %380 = vdwg.mxu0
    %v381 = vadd.f32 %v219, %v373
    %v382 = vadd.f32 %v224, %v378
    %v383 = vxor.u32 %v381, 2147483648
    %v384 = vxor.u32 %v382, 2147483648
    %v385 = vmul.f32 %v383, 1.442695
    %v386 = vpow.pop %v385
    %v387 = vmul.f32 %v384, 1.442695
    %v388 = vpow.pop %v387
    %v389 = vadd.f32 %v386, 1.0
    %v390 = vadd.f32 %v388, 1.0
    %v391 = vrcp.pop %v389
    %v392 = vmul.f32 1.0, %v391
    %v393 = vrcp.pop %v390
    %v394 = vmul.f32 1.0, %v393
    %v395 = vtanh.pop %v381
    %v396 = vtanh.pop %v382
    %399 = vrot.lane.b32.xlu0 %v298, 32
    %v400 = vpop.permute.xlu0 %399
    %401 = vrot.lane.b32.xlu0 %v299, 32
    %v402 = vpop.permute.xlu0 %401
    %v405 = vmul.f32 %v392, %v400
    %v406 = vmul.f32 %v394, %v402
    %409 = vrot.lane.b32.xlu0 %v395, 64
    %v410 = vpop.permute.xlu0 %409
    %411 = vrot.lane.b32.xlu0 %v396, 64
    %v412 = vpop.permute.xlu0 %411
    %v415 = vmul.f32 %v392, %v410
    %v416 = vmul.f32 %v394, %v412
    %419 = vrot.lane.b32.xlu0 %v415, 32
    %v420 = vpop.permute.xlu0 %419
    %421 = vrot.lane.b32.xlu0 %v416, 32
    %v422 = vpop.permute.xlu0 %421
    %v425 = vadd.f32 %v405, %v420
    %v426 = vadd.f32 %v406, %v422
    %v427 = vtanh.pop %v425
    %v428 = vtanh.pop %v426
    %431 = vrot.lane.b32.xlu0 %v427, 64
    %v432 = vpop.permute.xlu0 %431
    %433 = vrot.lane.b32.xlu0 %v428, 64
    %v434 = vpop.permute.xlu0 %433
    %v437 = vmul.f32 %v392, %v432
    %v438 = vmul.f32 %v394, %v434
    %440 = vrot.lane.b32.xlu0 %v438, 32
    %v441 = vpop.permute.xlu0 %440
    %vm443 = vcmask 261127
    %444 = vst.msk [vmem:[#allocation2 - $0x7] sm:$0x80] %vm443, %v441
    %446 = vrot.lane.b32.xlu0 %v437, 32
    %v447 = vpop.permute.xlu0 %446
    %v448 = vsel %vm103, %v447, 0
    %v450 = vsel %vm103, %v441, 0
    %452 = vmatprep.subr.mxu0 0.0
    %453 = vmatpush1.msra.mxu0 %v76
    %454 = vmatprep.subr.mxu0 0.0
    %455 = vmatpush1.msra.mxu0 %v77
    %456 = vmatprep.subr.mxu0 0.0
    %457 = vmatpush1.msra.mxu0 %v78
    %458 = vmatprep.subr.mxu0 0.0
    %459 = vmatpush1.msra.mxu0 %v79
    %460 = vmatprep.subr.mxu0 0.0
    %461 = vmatpush1.msra.mxu0 0.0
    %462 = vmatprep.subr.mxu0 0.0
    %463 = vmatpush1.msra.mxu0 0.0
    %464 = vmatprep.subr.mxu0 0.0
    %465 = vmatpush1.msra.mxu0 0.0
    %466 = vmatprep.subr.mxu0 0.0
    %467 = vmatpush1.msra.mxu0 0.0
    %468 = vmatprep.subr.mxu0 0.0
    %469 = vmatpush1.msra.mxu0 0.0
    %470 = vmatprep.subr.mxu0 0.0
    %471 = vmatpush1.msra.mxu0 0.0
    %472 = vmatprep.subr.mxu0 0.0
    %473 = vmatpush1.msra.mxu0 0.0
    %474 = vmatprep.subr.mxu0 0.0
    %475 = vmatpush1.msra.mxu0 0.0
    %476 = vmatprep.subr.mxu0 0.0
    %477 = vmatpush1.msra.mxu0 0.0
    %478 = vmatprep.subr.mxu0 0.0
    %479 = vmatpush1.msra.mxu0 0.0
    %480 = vmatprep.subr.mxu0 0.0
    %481 = vmatpush1.msra.mxu0 0.0
    %482 = vmatprep.subr.mxu0 0.0
    %483 = vmatpush1.msra.mxu0 0.0
    %484 = vmatprep.subr.mxu0 0.0
    %485 = vmatpush1.msra.mxu0 0.0
    %486 = vmatprep.subr.mxu0 0.0
    %487 = vmatpush1.msra.mxu0 0.0
    %488 = vmatprep.subr.mxu0 0.0
    %489 = vmatpush1.msra.mxu0 0.0
    %490 = vmatprep.subr.mxu0 0.0
    %491 = vmatpush1.msra.mxu0 0.0
    %492 = vmatprep.subr.mxu0 0.0
    %493 = vmatpush1.msra.mxu0 0.0
    %494 = vmatprep.subr.mxu0 0.0
    %495 = vmatpush1.msra.mxu0 0.0
    %496 = vmatprep.subr.mxu0 0.0
    %497 = vmatpush1.msra.mxu0 0.0
    %498 = vmatprep.subr.mxu0 0.0
    %499 = vmatpush1.msra.mxu0 0.0
    %500 = vmatprep.subr.mxu0 0.0
    %501 = vmatpush1.msra.mxu0 0.0
    %502 = vmatprep.subr.mxu0 0.0
    %503 = vmatpush1.msra.mxu0 0.0
    %504 = vmatprep.subr.mxu0 0.0
    %505 = vmatpush1.msra.mxu0 0.0
    %506 = vmatprep.subr.mxu0 0.0
    %507 = vmatpush1.msra.mxu0 0.0
    %508 = vmatprep.subr.mxu0 0.0
    %509 = vmatpush1.msra.mxu0 0.0
    %510 = vmatprep.subr.mxu0 0.0
    %511 = vmatpush1.msra.mxu0 0.0
    %512 = vmatprep.subr.mxu0 0.0
    %513 = vmatpush1.msra.mxu0 0.0
    %514 = vmatprep.subr.mxu0 0.0
    %515 = vmatpush1.msra.mxu0 0.0
    %516 = vmatprep.mubr.f32.mxu0 0.0
    %517 = vmatmul.mubr.f32.gmra.mrb[0].mxu0 %v448
    %v518 = vpop.f32.mrb[0].mxu0
    %v519 = vadd.f32 0.0, %v518
    %v520 = vpop.f32.mrb[0].mxu0
    %521 = vmatprep.mubr.f32.mxu0 0.0
    %522 = vmatmul.mubr.f32.gmra.mrb[0].mxu0 %v450
    %v523 = vpop.f32.mrb[0].mxu0
    %v524 = vadd.f32 0.0, %v523
    %v525 = vpop.f32.mrb[0].mxu0
    %526 = vdwg.mxu0
    %v527 = vadd.f32 %v229, %v519
    %v528 = vadd.f32 %v234, %v524
    %v529 = vxor.u32 %v527, 2147483648
    %v530 = vxor.u32 %v528, 2147483648
    %v531 = vmul.f32 %v529, 1.442695
    %v532 = vpow.pop %v531
    %v533 = vmul.f32 %v530, 1.442695
    %v534 = vpow.pop %v533
    %v535 = vadd.f32 %v532, 1.0
    %v536 = vadd.f32 %v534, 1.0
    %v537 = vrcp.pop %v535
    %v538 = vmul.f32 1.0, %v537
    %v539 = vrcp.pop %v536
    %v540 = vmul.f32 1.0, %v539
    %v541 = vtanh.pop %v527
    %v542 = vtanh.pop %v528
    %v543 = vmul.f32 %v538, %v425
    %v544 = vmul.f32 %v540, %v426
    %547 = vrot.lane.b32.xlu0 %v541, 64
    %v548 = vpop.permute.xlu0 %547
    %549 = vrot.lane.b32.xlu0 %v542, 64
    %v550 = vpop.permute.xlu0 %549
    %v553 = vmul.f32 %v538, %v548
    %v554 = vmul.f32 %v540, %v550
    %557 = vrot.lane.b32.xlu0 %v553, 32
    %v558 = vpop.permute.xlu0 %557
    %559 = vrot.lane.b32.xlu0 %v554, 32
    %v560 = vpop.permute.xlu0 %559
    %v563 = vadd.f32 %v543, %v558
    %v564 = vadd.f32 %v544, %v560
    %v565 = vtanh.pop %v563
    %v566 = vtanh.pop %v564
    %569 = vrot.lane.b32.xlu0 %v565, 64
    %v570 = vpop.permute.xlu0 %569
    %571 = vrot.lane.b32.xlu0 %v566, 64
    %v572 = vpop.permute.xlu0 %571
    %v575 = vmul.f32 %v538, %v570
    %v576 = vmul.f32 %v540, %v572
    %578 = vrot.lane.b32.xlu0 %v576, 32
    %v579 = vpop.permute.xlu0 %578
    %581 = vst.msk [vmem:[#allocation2 - $0x6] sm:$0x80] %vm443, %v579
    %583 = vrot.lane.b32.xlu0 %v575, 32
    %v584 = vpop.permute.xlu0 %583
    %v585 = vsel %vm103, %v584, 0
    %v587 = vsel %vm103, %v579, 0
    %589 = vmatprep.subr.mxu0 0.0
    %590 = vmatpush1.msra.mxu0 %v76
    %591 = vmatprep.subr.mxu0 0.0
    %592 = vmatpush1.msra.mxu0 %v77
    %593 = vmatprep.subr.mxu0 0.0
    %594 = vmatpush1.msra.mxu0 %v78
    %595 = vmatprep.subr.mxu0 0.0
    %596 = vmatpush1.msra.mxu0 %v79
    %597 = vmatprep.subr.mxu0 0.0
    %598 = vmatpush1.msra.mxu0 0.0
    %599 = vmatprep.subr.mxu0 0.0
    %600 = vmatpush1.msra.mxu0 0.0
    %601 = vmatprep.subr.mxu0 0.0
    %602 = vmatpush1.msra.mxu0 0.0
    %603 = vmatprep.subr.mxu0 0.0
    %604 = vmatpush1.msra.mxu0 0.0
    %605 = vmatprep.subr.mxu0 0.0
    %606 = vmatpush1.msra.mxu0 0.0
    %607 = vmatprep.subr.mxu0 0.0
    %608 = vmatpush1.msra.mxu0 0.0
    %609 = vmatprep.subr.mxu0 0.0
    %610 = vmatpush1.msra.mxu0 0.0
    %611 = vmatprep.subr.mxu0 0.0
    %612 = vmatpush1.msra.mxu0 0.0
    %613 = vmatprep.subr.mxu0 0.0
    %614 = vmatpush1.msra.mxu0 0.0
    %615 = vmatprep.subr.mxu0 0.0
    %616 = vmatpush1.msra.mxu0 0.0
    %617 = vmatprep.subr.mxu0 0.0
    %618 = vmatpush1.msra.mxu0 0.0
    %619 = vmatprep.subr.mxu0 0.0
    %620 = vmatpush1.msra.mxu0 0.0
    %621 = vmatprep.subr.mxu0 0.0
    %622 = vmatpush1.msra.mxu0 0.0
    %623 = vmatprep.subr.mxu0 0.0
    %624 = vmatpush1.msra.mxu0 0.0
    %625 = vmatprep.subr.mxu0 0.0
    %626 = vmatpush1.msra.mxu0 0.0
    %627 = vmatprep.subr.mxu0 0.0
    %628 = vmatpush1.msra.mxu0 0.0
    %629 = vmatprep.subr.mxu0 0.0
    %630 = vmatpush1.msra.mxu0 0.0
    %631 = vmatprep.subr.mxu0 0.0
    %632 = vmatpush1.msra.mxu0 0.0
    %633 = vmatprep.subr.mxu0 0.0
    %634 = vmatpush1.msra.mxu0 0.0
    %635 = vmatprep.subr.mxu0 0.0
    %636 = vmatpush1.msra.mxu0 0.0
    %637 = vmatprep.subr.mxu0 0.0
    %638 = vmatpush1.msra.mxu0 0.0
    %639 = vmatprep.subr.mxu0 0.0
    %640 = vmatpush1.msra.mxu0 0.0
    %641 = vmatprep.subr.mxu0 0.0
    %642 = vmatpush1.msra.mxu0 0.0
    %643 = vmatprep.subr.mxu0 0.0
    %644 = vmatpush1.msra.mxu0 0.0
    %645 = vmatprep.subr.mxu0 0.0
    %646 = vmatpush1.msra.mxu0 0.0
    %647 = vmatprep.subr.mxu0 0.0
    %648 = vmatpush1.msra.mxu0 0.0
    %649 = vmatprep.subr.mxu0 0.0
    %650 = vmatpush1.msra.mxu0 0.0
    %651 = vmatprep.subr.mxu0 0.0
    %652 = vmatpush1.msra.mxu0 0.0
    %653 = vmatprep.mubr.f32.mxu0 0.0
    %654 = vmatmul.mubr.f32.gmra.mrb[0].mxu0 %v585
    %v655 = vpop.f32.mrb[0].mxu0
    %v656 = vadd.f32 0.0, %v655
    %v657 = vpop.f32.mrb[0].mxu0
    %658 = vmatprep.mubr.f32.mxu0 0.0
    %659 = vmatmul.mubr.f32.gmra.mrb[0].mxu0 %v587
    %v660 = vpop.f32.mrb[0].mxu0
    %v661 = vadd.f32 0.0, %v660
    %v662 = vpop.f32.mrb[0].mxu0
    %663 = vdwg.mxu0
    %v664 = vadd.f32 %v239, %v656
    %v665 = vadd.f32 %v244, %v661
    %v666 = vxor.u32 %v664, 2147483648
    %v667 = vxor.u32 %v665, 2147483648
    %v668 = vmul.f32 %v666, 1.442695
    %v669 = vpow.pop %v668
    %v670 = vmul.f32 %v667, 1.442695
    %v671 = vpow.pop %v670
    %v672 = vadd.f32 %v669, 1.0
    %v673 = vadd.f32 %v671, 1.0
    %v674 = vrcp.pop %v672
    %v675 = vmul.f32 1.0, %v674
    %v676 = vrcp.pop %v673
    %v677 = vmul.f32 1.0, %v676
    %v678 = vtanh.pop %v664
    %v679 = vtanh.pop %v665
    %v680 = vmul.f32 %v675, %v563
    %v681 = vmul.f32 %v677, %v564
    %684 = vrot.lane.b32.xlu0 %v678, 64
    %v685 = vpop.permute.xlu0 %684
    %686 = vrot.lane.b32.xlu0 %v679, 64
    %v687 = vpop.permute.xlu0 %686
    %v690 = vmul.f32 %v675, %v685
    %v691 = vmul.f32 %v677, %v687
    %694 = vrot.lane.b32.xlu0 %v690, 32
    %v695 = vpop.permute.xlu0 %694
    %696 = vrot.lane.b32.xlu0 %v691, 32
    %v697 = vpop.permute.xlu0 %696
    %v700 = vadd.f32 %v680, %v695
    %v701 = vadd.f32 %v681, %v697
    %v702 = vtanh.pop %v700
    %v703 = vtanh.pop %v701
    %706 = vrot.lane.b32.xlu0 %v702, 64
    %v707 = vpop.permute.xlu0 %706
    %708 = vrot.lane.b32.xlu0 %v703, 64
    %v709 = vpop.permute.xlu0 %708
    %v712 = vmul.f32 %v675, %v707
    %v713 = vmul.f32 %v677, %v709
    %715 = vrot.lane.b32.xlu0 %v713, 32
    %v716 = vpop.permute.xlu0 %715
    %718 = vst.msk [vmem:[#allocation2 - $0x5] sm:$0x80] %vm443, %v716
    %720 = vrot.lane.b32.xlu0 %v712, 32
    %v721 = vpop.permute.xlu0 %720
    %v722 = vsel %vm103, %v721, 0
    %v724 = vsel %vm103, %v716, 0
    %726 = vmatprep.subr.mxu0 0.0
    %727 = vmatpush1.msra.mxu0 %v76
    %728 = vmatprep.subr.mxu0 0.0
    %729 = vmatpush1.msra.mxu0 %v77
    %730 = vmatprep.subr.mxu0 0.0
    %731 = vmatpush1.msra.mxu0 %v78
    %732 = vmatprep.subr.mxu0 0.0
    %733 = vmatpush1.msra.mxu0 %v79
    %734 = vmatprep.subr.mxu0 0.0
    %735 = vmatpush1.msra.mxu0 0.0
    %736 = vmatprep.subr.mxu0 0.0
    %737 = vmatpush1.msra.mxu0 0.0
    %738 = vmatprep.subr.mxu0 0.0
    %739 = vmatpush1.msra.mxu0 0.0
    %740 = vmatprep.subr.mxu0 0.0
    %741 = vmatpush1.msra.mxu0 0.0
    %742 = vmatprep.subr.mxu0 0.0
    %743 = vmatpush1.msra.mxu0 0.0
    %744 = vmatprep.subr.mxu0 0.0
    %745 = vmatpush1.msra.mxu0 0.0
    %746 = vmatprep.subr.mxu0 0.0
    %747 = vmatpush1.msra.mxu0 0.0
    %748 = vmatprep.subr.mxu0 0.0
    %749 = vmatpush1.msra.mxu0 0.0
    %750 = vmatprep.subr.mxu0 0.0
    %751 = vmatpush1.msra.mxu0 0.0
    %752 = vmatprep.subr.mxu0 0.0
    %753 = vmatpush1.msra.mxu0 0.0
    %754 = vmatprep.subr.mxu0 0.0
    %755 = vmatpush1.msra.mxu0 0.0
    %756 = vmatprep.subr.mxu0 0.0
    %757 = vmatpush1.msra.mxu0 0.0
    %758 = vmatprep.subr.mxu0 0.0
    %759 = vmatpush1.msra.mxu0 0.0
    %760 = vmatprep.subr.mxu0 0.0
    %761 = vmatpush1.msra.mxu0 0.0
    %762 = vmatprep.subr.mxu0 0.0
    %763 = vmatpush1.msra.mxu0 0.0
    %764 = vmatprep.subr.mxu0 0.0
    %765 = vmatpush1.msra.mxu0 0.0
    %766 = vmatprep.subr.mxu0 0.0
    %767 = vmatpush1.msra.mxu0 0.0
    %768 = vmatprep.subr.mxu0 0.0
    %769 = vmatpush1.msra.mxu0 0.0
    %770 = vmatprep.subr.mxu0 0.0
    %771 = vmatpush1.msra.mxu0 0.0
    %772 = vmatprep.subr.mxu0 0.0
    %773 = vmatpush1.msra.mxu0 0.0
    %774 = vmatprep.subr.mxu0 0.0
    %775 = vmatpush1.msra.mxu0 0.0
    %776 = vmatprep.subr.mxu0 0.0
    %777 = vmatpush1.msra.mxu0 0.0
    %778 = vmatprep.subr.mxu0 0.0
    %779 = vmatpush1.msra.mxu0 0.0
    %780 = vmatprep.subr.mxu0 0.0
    %781 = vmatpush1.msra.mxu0 0.0
    %782 = vmatprep.subr.mxu0 0.0
    %783 = vmatpush1.msra.mxu0 0.0
    %784 = vmatprep.subr.mxu0 0.0
    %785 = vmatpush1.msra.mxu0 0.0
    %786 = vmatprep.subr.mxu0 0.0
    %787 = vmatpush1.msra.mxu0 0.0
    %788 = vmatprep.subr.mxu0 0.0
    %789 = vmatpush1.msra.mxu0 0.0
    %790 = vmatprep.mubr.f32.mxu0 0.0
    %791 = vmatmul.mubr.f32.gmra.mrb[0].mxu0 %v722
    %v792 = vpop.f32.mrb[0].mxu0
    %v793 = vadd.f32 0.0, %v792
    %v794 = vpop.f32.mrb[0].mxu0
    %795 = vmatprep.mubr.f32.mxu0 0.0
    %796 = vmatmul.mubr.f32.gmra.mrb[0].mxu0 %v724
    %v797 = vpop.f32.mrb[0].mxu0
    %v798 = vadd.f32 0.0, %v797
    %v799 = vpop.f32.mrb[0].mxu0
    %800 = vdwg.mxu0
    %v801 = vadd.f32 %v249, %v793
    %v802 = vadd.f32 %v254, %v798
    %v803 = vxor.u32 %v801, 2147483648
    %v804 = vxor.u32 %v802, 2147483648
    %v805 = vmul.f32 %v803, 1.442695
    %v806 = vpow.pop %v805
    %v807 = vmul.f32 %v804, 1.442695
    %v808 = vpow.pop %v807
    %v809 = vadd.f32 %v806, 1.0
    %v810 = vadd.f32 %v808, 1.0
    %v811 = vrcp.pop %v809
    %v812 = vmul.f32 1.0, %v811
    %v813 = vrcp.pop %v810
    %v814 = vmul.f32 1.0, %v813
    %v815 = vtanh.pop %v801
    %v816 = vtanh.pop %v802
    %v817 = vmul.f32 %v812, %v700
    %v818 = vmul.f32 %v814, %v701
    %821 = vrot.lane.b32.xlu0 %v815, 64
    %v822 = vpop.permute.xlu0 %821
    %823 = vrot.lane.b32.xlu0 %v816, 64
    %v824 = vpop.permute.xlu0 %823
    %v827 = vmul.f32 %v812, %v822
    %v828 = vmul.f32 %v814, %v824
    %831 = vrot.lane.b32.xlu0 %v827, 32
    %v832 = vpop.permute.xlu0 %831
    %833 = vrot.lane.b32.xlu0 %v828, 32
    %v834 = vpop.permute.xlu0 %833
    %v837 = vadd.f32 %v817, %v832
    %v838 = vadd.f32 %v818, %v834
    %v839 = vtanh.pop %v837
    %v840 = vtanh.pop %v838
    %843 = vrot.lane.b32.xlu0 %v839, 64
    %v844 = vpop.permute.xlu0 %843
    %845 = vrot.lane.b32.xlu0 %v840, 64
    %v846 = vpop.permute.xlu0 %845
    %v849 = vmul.f32 %v812, %v844
    %v850 = vmul.f32 %v814, %v846
    %852 = vrot.lane.b32.xlu0 %v850, 32
    %v853 = vpop.permute.xlu0 %852
    %855 = vst.msk [vmem:[#allocation2 - $0x4] sm:$0x80] %vm443, %v853
    %857 = vrot.lane.b32.xlu0 %v849, 32
    %v858 = vpop.permute.xlu0 %857
    %v859 = vsel %vm103, %v858, 0
    %v861 = vsel %vm103, %v853, 0
    %863 = vmatprep.subr.mxu0 0.0
    %864 = vmatpush1.msra.mxu0 %v76
    %865 = vmatprep.subr.mxu0 0.0
    %866 = vmatpush1.msra.mxu0 %v77
    %867 = vmatprep.subr.mxu0 0.0
    %868 = vmatpush1.msra.mxu0 %v78
    %869 = vmatprep.subr.mxu0 0.0
    %870 = vmatpush1.msra.mxu0 %v79
    %871 = vmatprep.subr.mxu0 0.0
    %872 = vmatpush1.msra.mxu0 0.0
    %873 = vmatprep.subr.mxu0 0.0
    %874 = vmatpush1.msra.mxu0 0.0
    %875 = vmatprep.subr.mxu0 0.0
    %876 = vmatpush1.msra.mxu0 0.0
    %877 = vmatprep.subr.mxu0 0.0
    %878 = vmatpush1.msra.mxu0 0.0
    %879 = vmatprep.subr.mxu0 0.0
    %880 = vmatpush1.msra.mxu0 0.0
    %881 = vmatprep.subr.mxu0 0.0
    %882 = vmatpush1.msra.mxu0 0.0
    %883 = vmatprep.subr.mxu0 0.0
    %884 = vmatpush1.msra.mxu0 0.0
    %885 = vmatprep.subr.mxu0 0.0
    %886 = vmatpush1.msra.mxu0 0.0
    %887 = vmatprep.subr.mxu0 0.0
    %888 = vmatpush1.msra.mxu0 0.0
    %889 = vmatprep.subr.mxu0 0.0
    %890 = vmatpush1.msra.mxu0 0.0
    %891 = vmatprep.subr.mxu0 0.0
    %892 = vmatpush1.msra.mxu0 0.0
    %893 = vmatprep.subr.mxu0 0.0
    %894 = vmatpush1.msra.mxu0 0.0
    %895 = vmatprep.subr.mxu0 0.0
    %896 = vmatpush1.msra.mxu0 0.0
    %897 = vmatprep.subr.mxu0 0.0
    %898 = vmatpush1.msra.mxu0 0.0
    %899 = vmatprep.subr.mxu0 0.0
    %900 = vmatpush1.msra.mxu0 0.0
    %901 = vmatprep.subr.mxu0 0.0
    %902 = vmatpush1.msra.mxu0 0.0
    %903 = vmatprep.subr.mxu0 0.0
    %904 = vmatpush1.msra.mxu0 0.0
    %905 = vmatprep.subr.mxu0 0.0
    %906 = vmatpush1.msra.mxu0 0.0
    %907 = vmatprep.subr.mxu0 0.0
    %908 = vmatpush1.msra.mxu0 0.0
    %909 = vmatprep.subr.mxu0 0.0
    %910 = vmatpush1.msra.mxu0 0.0
    %911 = vmatprep.subr.mxu0 0.0
    %912 = vmatpush1.msra.mxu0 0.0
    %913 = vmatprep.subr.mxu0 0.0
    %914 = vmatpush1.msra.mxu0 0.0
    %915 = vmatprep.subr.mxu0 0.0
    %916 = vmatpush1.msra.mxu0 0.0
    %917 = vmatprep.subr.mxu0 0.0
    %918 = vmatpush1.msra.mxu0 0.0
    %919 = vmatprep.subr.mxu0 0.0
    %920 = vmatpush1.msra.mxu0 0.0
    %921 = vmatprep.subr.mxu0 0.0
    %922 = vmatpush1.msra.mxu0 0.0
    %923 = vmatprep.subr.mxu0 0.0
    %924 = vmatpush1.msra.mxu0 0.0
    %925 = vmatprep.subr.mxu0 0.0
    %926 = vmatpush1.msra.mxu0 0.0
    %927 = vmatprep.mubr.f32.mxu0 0.0
    %928 = vmatmul.mubr.f32.gmra.mrb[0].mxu0 %v859
    %v929 = vpop.f32.mrb[0].mxu0
    %v930 = vadd.f32 0.0, %v929
    %v931 = vpop.f32.mrb[0].mxu0
    %932 = vmatprep.mubr.f32.mxu0 0.0
    %933 = vmatmul.mubr.f32.gmra.mrb[0].mxu0 %v861
    %v934 = vpop.f32.mrb[0].mxu0
    %v935 = vadd.f32 0.0, %v934
    %v936 = vpop.f32.mrb[0].mxu0
    %937 = vdwg.mxu0
    %v938 = vadd.f32 %v259, %v930
    %v939 = vadd.f32 %v264, %v935
    %v940 = vxor.u32 %v938, 2147483648
    %v941 = vxor.u32 %v939, 2147483648
    %v942 = vmul.f32 %v940, 1.442695
    %v943 = vpow.pop %v942
    %v944 = vmul.f32 %v941, 1.442695
    %v945 = vpow.pop %v944
    %v946 = vadd.f32 %v943, 1.0
    %v947 = vadd.f32 %v945, 1.0
    %v948 = vrcp.pop %v946
    %v949 = vmul.f32 1.0, %v948
    %v950 = vrcp.pop %v947
    %v951 = vmul.f32 1.0, %v950
    %v952 = vtanh.pop %v938
    %v953 = vtanh.pop %v939
    %v954 = vmul.f32 %v949, %v837
    %v955 = vmul.f32 %v951, %v838
    %958 = vrot.lane.b32.xlu0 %v952, 64
    %v959 = vpop.permute.xlu0 %958
    %960 = vrot.lane.b32.xlu0 %v953, 64
    %v961 = vpop.permute.xlu0 %960
    %v964 = vmul.f32 %v949, %v959
    %v965 = vmul.f32 %v951, %v961
    %968 = vrot.lane.b32.xlu0 %v964, 32
    %v969 = vpop.permute.xlu0 %968
    %970 = vrot.lane.b32.xlu0 %v965, 32
    %v971 = vpop.permute.xlu0 %970
    %v974 = vadd.f32 %v954, %v969
    %v975 = vadd.f32 %v955, %v971
    %v976 = vtanh.pop %v974
    %v977 = vtanh.pop %v975
    %980 = vrot.lane.b32.xlu0 %v976, 64
    %v981 = vpop.permute.xlu0 %980
    %982 = vrot.lane.b32.xlu0 %v977, 64
    %v983 = vpop.permute.xlu0 %982
    %v986 = vmul.f32 %v949, %v981
    %v987 = vmul.f32 %v951, %v983
    %989 = vrot.lane.b32.xlu0 %v987, 32
    %v990 = vpop.permute.xlu0 %989
    %992 = vst.msk [vmem:[#allocation2 - $0x3] sm:$0x80] %vm443, %v990
    %994 = vrot.lane.b32.xlu0 %v986, 32
    %v995 = vpop.permute.xlu0 %994
    %v996 = vsel %vm103, %v995, 0
    %v998 = vsel %vm103, %v990, 0
    %1000 = vmatprep.subr.mxu0 0.0
    %1001 = vmatpush1.msra.mxu0 %v76
    %1002 = vmatprep.subr.mxu0 0.0
    %1003 = vmatpush1.msra.mxu0 %v77
    %1004 = vmatprep.subr.mxu0 0.0
    %1005 = vmatpush1.msra.mxu0 %v78
    %1006 = vmatprep.subr.mxu0 0.0
    %1007 = vmatpush1.msra.mxu0 %v79
    %1008 = vmatprep.subr.mxu0 0.0
    %1009 = vmatpush1.msra.mxu0 0.0
    %1010 = vmatprep.subr.mxu0 0.0
    %1011 = vmatpush1.msra.mxu0 0.0
    %1012 = vmatprep.subr.mxu0 0.0
    %1013 = vmatpush1.msra.mxu0 0.0
    %1014 = vmatprep.subr.mxu0 0.0
    %1015 = vmatpush1.msra.mxu0 0.0
    %1016 = vmatprep.subr.mxu0 0.0
    %1017 = vmatpush1.msra.mxu0 0.0
    %1018 = vmatprep.subr.mxu0 0.0
    %1019 = vmatpush1.msra.mxu0 0.0
    %1020 = vmatprep.subr.mxu0 0.0
    %1021 = vmatpush1.msra.mxu0 0.0
    %1022 = vmatprep.subr.mxu0 0.0
    %1023 = vmatpush1.msra.mxu0 0.0
    %1024 = vmatprep.subr.mxu0 0.0
    %1025 = vmatpush1.msra.mxu0 0.0
    %1026 = vmatprep.subr.mxu0 0.0
    %1027 = vmatpush1.msra.mxu0 0.0
    %1028 = vmatprep.subr.mxu0 0.0
    %1029 = vmatpush1.msra.mxu0 0.0
    %1030 = vmatprep.subr.mxu0 0.0
    %1031 = vmatpush1.msra.mxu0 0.0
    %1032 = vmatprep.subr.mxu0 0.0
    %1033 = vmatpush1.msra.mxu0 0.0
    %1034 = vmatprep.subr.mxu0 0.0
    %1035 = vmatpush1.msra.mxu0 0.0
    %1036 = vmatprep.subr.mxu0 0.0
    %1037 = vmatpush1.msra.mxu0 0.0
    %1038 = vmatprep.subr.mxu0 0.0
    %1039 = vmatpush1.msra.mxu0 0.0
    %1040 = vmatprep.subr.mxu0 0.0
    %1041 = vmatpush1.msra.mxu0 0.0
    %1042 = vmatprep.subr.mxu0 0.0
    %1043 = vmatpush1.msra.mxu0 0.0
    %1044 = vmatprep.subr.mxu0 0.0
    %1045 = vmatpush1.msra.mxu0 0.0
    %1046 = vmatprep.subr.mxu0 0.0
    %1047 = vmatpush1.msra.mxu0 0.0
    %1048 = vmatprep.subr.mxu0 0.0
    %1049 = vmatpush1.msra.mxu0 0.0
    %1050 = vmatprep.subr.mxu0 0.0
    %1051 = vmatpush1.msra.mxu0 0.0
    %1052 = vmatprep.subr.mxu0 0.0
    %1053 = vmatpush1.msra.mxu0 0.0
    %1054 = vmatprep.subr.mxu0 0.0
    %1055 = vmatpush1.msra.mxu0 0.0
    %1056 = vmatprep.subr.mxu0 0.0
    %1057 = vmatpush1.msra.mxu0 0.0
    %1058 = vmatprep.subr.mxu0 0.0
    %1059 = vmatpush1.msra.mxu0 0.0
    %1060 = vmatprep.subr.mxu0 0.0
    %1061 = vmatpush1.msra.mxu0 0.0
    %1062 = vmatprep.subr.mxu0 0.0
    %1063 = vmatpush1.msra.mxu0 0.0
    %1064 = vmatprep.mubr.f32.mxu0 0.0
    %1065 = vmatmul.mubr.f32.gmra.mrb[0].mxu0 %v996
    %v1066 = vpop.f32.mrb[0].mxu0
    %v1067 = vadd.f32 0.0, %v1066
    %v1068 = vpop.f32.mrb[0].mxu0
    %1069 = vmatprep.mubr.f32.mxu0 0.0
    %1070 = vmatmul.mubr.f32.gmra.mrb[0].mxu0 %v998
    %v1071 = vpop.f32.mrb[0].mxu0
    %v1072 = vadd.f32 0.0, %v1071
    %v1073 = vpop.f32.mrb[0].mxu0
    %1074 = vdwg.mxu0
    %v1075 = vadd.f32 %v269, %v1067
    %v1076 = vadd.f32 %v274, %v1072
    %v1077 = vxor.u32 %v1075, 2147483648
    %v1078 = vxor.u32 %v1076, 2147483648
    %v1079 = vmul.f32 %v1077, 1.442695
    %v1080 = vpow.pop %v1079
    %v1081 = vmul.f32 %v1078, 1.442695
    %v1082 = vpow.pop %v1081
    %v1083 = vadd.f32 %v1080, 1.0
    %v1084 = vadd.f32 %v1082, 1.0
    %v1085 = vrcp.pop %v1083
    %v1086 = vmul.f32 1.0, %v1085
    %v1087 = vrcp.pop %v1084
    %v1088 = vmul.f32 1.0, %v1087
    %v1089 = vtanh.pop %v1075
    %v1090 = vtanh.pop %v1076
    %v1091 = vmul.f32 %v1086, %v974
    %v1092 = vmul.f32 %v1088, %v975
    %1095 = vrot.lane.b32.xlu0 %v1089, 64
    %v1096 = vpop.permute.xlu0 %1095
    %1097 = vrot.lane.b32.xlu0 %v1090, 64
    %v1098 = vpop.permute.xlu0 %1097
    %v1101 = vmul.f32 %v1086, %v1096
    %v1102 = vmul.f32 %v1088, %v1098
    %1105 = vrot.lane.b32.xlu0 %v1101, 32
    %v1106 = vpop.permute.xlu0 %1105
    %1107 = vrot.lane.b32.xlu0 %v1102, 32
    %v1108 = vpop.permute.xlu0 %1107
    %v1111 = vadd.f32 %v1091, %v1106
    %v1112 = vadd.f32 %v1092, %v1108
    %v1113 = vtanh.pop %v1111
    %v1114 = vtanh.pop %v1112
    %1117 = vrot.lane.b32.xlu0 %v1113, 64
    %v1118 = vpop.permute.xlu0 %1117
    %1119 = vrot.lane.b32.xlu0 %v1114, 64
    %v1120 = vpop.permute.xlu0 %1119
    %v1123 = vmul.f32 %v1086, %v1118
    %v1124 = vmul.f32 %v1088, %v1120
    %1126 = vrot.lane.b32.xlu0 %v1124, 32
    %v1127 = vpop.permute.xlu0 %1126
    %1129 = vst.msk [vmem:[#allocation2 - $0x2] sm:$0x80] %vm443, %v1127
    %1131 = vrot.lane.b32.xlu0 %v1123, 32
    %v1132 = vpop.permute.xlu0 %1131
    %v1133 = vsel %vm103, %v1132, 0
    %v1135 = vsel %vm103, %v1127, 0
    %1137 = vmatprep.subr.mxu0 0.0
    %1138 = vmatpush1.msra.mxu0 %v76
    %1139 = vmatprep.subr.mxu0 0.0
    %1140 = vmatpush1.msra.mxu0 %v77
    %1141 = vmatprep.subr.mxu0 0.0
    %1142 = vmatpush1.msra.mxu0 %v78
    %1143 = vmatprep.subr.mxu0 0.0
    %1144 = vmatpush1.msra.mxu0 %v79
    %1145 = vmatprep.subr.mxu0 0.0
    %1146 = vmatpush1.msra.mxu0 0.0
    %1147 = vmatprep.subr.mxu0 0.0
    %1148 = vmatpush1.msra.mxu0 0.0
    %1149 = vmatprep.subr.mxu0 0.0
    %1150 = vmatpush1.msra.mxu0 0.0
    %1151 = vmatprep.subr.mxu0 0.0
    %1152 = vmatpush1.msra.mxu0 0.0
    %1153 = vmatprep.subr.mxu0 0.0
    %1154 = vmatpush1.msra.mxu0 0.0
    %1155 = vmatprep.subr.mxu0 0.0
    %1156 = vmatpush1.msra.mxu0 0.0
    %1157 = vmatprep.subr.mxu0 0.0
    %1158 = vmatpush1.msra.mxu0 0.0
    %1159 = vmatprep.subr.mxu0 0.0
    %1160 = vmatpush1.msra.mxu0 0.0
    %1161 = vmatprep.subr.mxu0 0.0
    %1162 = vmatpush1.msra.mxu0 0.0
    %1163 = vmatprep.subr.mxu0 0.0
    %1164 = vmatpush1.msra.mxu0 0.0
    %1165 = vmatprep.subr.mxu0 0.0
    %1166 = vmatpush1.msra.mxu0 0.0
    %1167 = vmatprep.subr.mxu0 0.0
    %1168 = vmatpush1.msra.mxu0 0.0
    %1169 = vmatprep.subr.mxu0 0.0
    %1170 = vmatpush1.msra.mxu0 0.0
    %1171 = vmatprep.subr.mxu0 0.0
    %1172 = vmatpush1.msra.mxu0 0.0
    %1173 = vmatprep.subr.mxu0 0.0
    %1174 = vmatpush1.msra.mxu0 0.0
    %1175 = vmatprep.subr.mxu0 0.0
    %1176 = vmatpush1.msra.mxu0 0.0
    %1177 = vmatprep.subr.mxu0 0.0
    %1178 = vmatpush1.msra.mxu0 0.0
    %1179 = vmatprep.subr.mxu0 0.0
    %1180 = vmatpush1.msra.mxu0 0.0
    %1181 = vmatprep.subr.mxu0 0.0
    %1182 = vmatpush1.msra.mxu0 0.0
    %1183 = vmatprep.subr.mxu0 0.0
    %1184 = vmatpush1.msra.mxu0 0.0
    %1185 = vmatprep.subr.mxu0 0.0
    %1186 = vmatpush1.msra.mxu0 0.0
    %1187 = vmatprep.subr.mxu0 0.0
    %1188 = vmatpush1.msra.mxu0 0.0
    %1189 = vmatprep.subr.mxu0 0.0
    %1190 = vmatpush1.msra.mxu0 0.0
    %1191 = vmatprep.subr.mxu0 0.0
    %1192 = vmatpush1.msra.mxu0 0.0
    %1193 = vmatprep.subr.mxu0 0.0
    %1194 = vmatpush1.msra.mxu0 0.0
    %1195 = vmatprep.subr.mxu0 0.0
    %1196 = vmatpush1.msra.mxu0 0.0
    %1197 = vmatprep.subr.mxu0 0.0
    %1198 = vmatpush1.msra.mxu0 0.0
    %1199 = vmatprep.subr.mxu0 0.0
    %1200 = vmatpush1.msra.mxu0 0.0
    %1201 = vmatprep.mubr.f32.mxu0 0.0
    %1202 = vmatmul.mubr.f32.gmra.mrb[0].mxu0 %v1133
    %v1203 = vpop.f32.mrb[0].mxu0
    %v1204 = vadd.f32 0.0, %v1203
    %v1205 = vpop.f32.mrb[0].mxu0
    %1206 = vmatprep.mubr.f32.mxu0 0.0
    %1207 = vmatmul.mubr.f32.gmra.mrb[0].mxu0 %v1135
    %v1208 = vpop.f32.mrb[0].mxu0
    %v1209 = vadd.f32 0.0, %v1208
    %v1210 = vpop.f32.mrb[0].mxu0
    %1211 = vdwg.mxu0
    %v1212 = vadd.f32 %v279, %v1204
    %v1213 = vadd.f32 %v284, %v1209
    %v1214 = vxor.u32 %v1212, 2147483648
    %v1215 = vxor.u32 %v1213, 2147483648
    %v1216 = vmul.f32 %v1214, 1.442695
    %v1217 = vpow.pop %v1216
    %v1218 = vmul.f32 %v1215, 1.442695
    %v1219 = vpow.pop %v1218
    %v1220 = vadd.f32 %v1217, 1.0
    %v1221 = vadd.f32 %v1219, 1.0
    %v1222 = vrcp.pop %v1220
    %v1223 = vmul.f32 1.0, %v1222
    %v1224 = vrcp.pop %v1221
    %v1225 = vmul.f32 1.0, %v1224
    %v1226 = vtanh.pop %v1212
    %v1227 = vtanh.pop %v1213
    %v1228 = vmul.f32 %v1223, %v1111
    %v1229 = vmul.f32 %v1225, %v1112
    %1232 = vrot.lane.b32.xlu0 %v1226, 64
    %v1233 = vpop.permute.xlu0 %1232
    %1234 = vrot.lane.b32.xlu0 %v1227, 64
    %v1235 = vpop.permute.xlu0 %1234
    %v1238 = vmul.f32 %v1223, %v1233
    %v1239 = vmul.f32 %v1225, %v1235
    %1242 = vrot.lane.b32.xlu0 %v1238, 32
    %v1243 = vpop.permute.xlu0 %1242
    %1244 = vrot.lane.b32.xlu0 %v1239, 32
    %v1245 = vpop.permute.xlu0 %1244
    %v1248 = vadd.f32 %v1228, %v1243
    %v1249 = vadd.f32 %v1229, %v1245
    %v1250 = vtanh.pop %v1248
    %v1251 = vtanh.pop %v1249
    %1254 = vrot.lane.b32.xlu0 %v1250, 64
    %v1255 = vpop.permute.xlu0 %1254
    %1256 = vrot.lane.b32.xlu0 %v1251, 64
    %v1257 = vpop.permute.xlu0 %1256
    %v1260 = vmul.f32 %v1223, %v1255
    %v1261 = vmul.f32 %v1225, %v1257
    %1263 = vrot.lane.b32.xlu0 %v1261, 32
    %v1264 = vpop.permute.xlu0 %1263
    %1266 = vst.msk [vmem:[#allocation2 - $0x1] sm:$0x80] %vm443, %v1264
    %1268 = vrot.lane.b32.xlu0 %v1260, 32
    %v1269 = vpop.permute.xlu0 %1268
    %v1270 = vsel %vm103, %v1269, 0
    %v1272 = vsel %vm103, %v1264, 0
    %1274 = vmatprep.subr.mxu0 0.0
    %1275 = vmatpush1.msra.mxu0 %v76
    %1276 = vmatprep.subr.mxu0 0.0
    %1277 = vmatpush1.msra.mxu0 %v77
    %1278 = vmatprep.subr.mxu0 0.0
    %1279 = vmatpush1.msra.mxu0 %v78
    %1280 = vmatprep.subr.mxu0 0.0
    %1281 = vmatpush1.msra.mxu0 %v79
    %1282 = vmatprep.subr.mxu0 0.0
    %1283 = vmatpush1.msra.mxu0 0.0
    %1284 = vmatprep.subr.mxu0 0.0
    %1285 = vmatpush1.msra.mxu0 0.0
    %1286 = vmatprep.subr.mxu0 0.0
    %1287 = vmatpush1.msra.mxu0 0.0
    %1288 = vmatprep.subr.mxu0 0.0
    %1289 = vmatpush1.msra.mxu0 0.0
    %1290 = vmatprep.subr.mxu0 0.0
    %1291 = vmatpush1.msra.mxu0 0.0
    %1292 = vmatprep.subr.mxu0 0.0
    %1293 = vmatpush1.msra.mxu0 0.0
    %1294 = vmatprep.subr.mxu0 0.0
    %1295 = vmatpush1.msra.mxu0 0.0
    %1296 = vmatprep.subr.mxu0 0.0
    %1297 = vmatpush1.msra.mxu0 0.0
    %1298 = vmatprep.subr.mxu0 0.0
    %1299 = vmatpush1.msra.mxu0 0.0
    %1300 = vmatprep.subr.mxu0 0.0
    %1301 = vmatpush1.msra.mxu0 0.0
    %1302 = vmatprep.subr.mxu0 0.0
    %1303 = vmatpush1.msra.mxu0 0.0
    %1304 = vmatprep.subr.mxu0 0.0
    %1305 = vmatpush1.msra.mxu0 0.0
    %1306 = vmatprep.subr.mxu0 0.0
    %1307 = vmatpush1.msra.mxu0 0.0
    %1308 = vmatprep.subr.mxu0 0.0
    %1309 = vmatpush1.msra.mxu0 0.0
    %1310 = vmatprep.subr.mxu0 0.0
    %1311 = vmatpush1.msra.mxu0 0.0
    %1312 = vmatprep.subr.mxu0 0.0
    %1313 = vmatpush1.msra.mxu0 0.0
    %1314 = vmatprep.subr.mxu0 0.0
    %1315 = vmatpush1.msra.mxu0 0.0
    %1316 = vmatprep.subr.mxu0 0.0
    %1317 = vmatpush1.msra.mxu0 0.0
    %1318 = vmatprep.subr.mxu0 0.0
    %1319 = vmatpush1.msra.mxu0 0.0
    %1320 = vmatprep.subr.mxu0 0.0
    %1321 = vmatpush1.msra.mxu0 0.0
    %1322 = vmatprep.subr.mxu0 0.0
    %1323 = vmatpush1.msra.mxu0 0.0
    %1324 = vmatprep.subr.mxu0 0.0
    %1325 = vmatpush1.msra.mxu0 0.0
    %1326 = vmatprep.subr.mxu0 0.0
    %1327 = vmatpush1.msra.mxu0 0.0
    %1328 = vmatprep.subr.mxu0 0.0
    %1329 = vmatpush1.msra.mxu0 0.0
    %1330 = vmatprep.subr.mxu0 0.0
    %1331 = vmatpush1.msra.mxu0 0.0
    %1332 = vmatprep.subr.mxu0 0.0
    %1333 = vmatpush1.msra.mxu0 0.0
    %1334 = vmatprep.subr.mxu0 0.0
    %1335 = vmatpush1.msra.mxu0 0.0
    %1336 = vmatprep.subr.mxu0 0.0
    %1337 = vmatpush1.msra.mxu0 0.0
    %1338 = vmatprep.mubr.f32.mxu0 0.0
    %1339 = vmatmul.mubr.f32.gmra.mrb[0].mxu0 %v1270
    %v1340 = vpop.f32.mrb[0].mxu0
    %v1341 = vpop.f32.mrb[0].mxu0
    %1342 = vmatprep.mubr.f32.mxu0 0.0
    %1343 = vmatmul.mubr.f32.gmra.mrb[0].mxu0 %v1272
    %v1344 = vpop.f32.mrb[0].mxu0
    %v1345 = vadd.f32 0.0, %v1344
    %v1346 = vpop.f32.mrb[0].mxu0
    %1347 = vdwg.mxu0
    %v1348 = vadd.f32 %v293, %v1345
    %v1349 = vxor.u32 %v1348, 2147483648
    %v1350 = vmul.f32 %v1349, 1.442695
    %v1351 = vpow.pop %v1350
    %v1352 = vadd.f32 %v1351, 1.0
    %v1353 = vrcp.pop %v1352
    %v1354 = vmul.f32 1.0, %v1353
    %v1355 = vtanh.pop %v1348
    %v1356 = vmul.f32 %v1354, %v1249
    %1358 = vrot.lane.b32.xlu0 %v1355, 64
    %v1359 = vpop.permute.xlu0 %1358
    %v1361 = vmul.f32 %v1354, %v1359
    %1363 = vrot.lane.b32.xlu0 %v1361, 32
    %v1364 = vpop.permute.xlu0 %1363
    %v1366 = vadd.f32 %v1356, %v1364
    %v1367 = vtanh.pop %v1366
    %1369 = vrot.lane.b32.xlu0 %v1367, 64
    %v1370 = vpop.permute.xlu0 %1369
    %v1372 = vmul.f32 %v1354, %v1370
    %1374 = vrot.lane.b32.xlu0 %v1372, 32
    %v1375 = vpop.permute.xlu0 %1374
    %1377 = vst.msk [vmem:[#allocation2] sm:$0x80] %vm443, %v1375
    %v1378 = vld [vmem:[#allocation2] sm:$0xff]
    %v1379 = vld [vmem:[%s6] sm:$0xff]
    %v1380 = vld [vmem:[%s6 + $0x8] sm:$0xff]
    %v1381 = vld [vmem:[%s6 + $0x10] sm:$0xff]
    %v1382 = vld [vmem:[%s6 + $0x18] sm:$0xff]
    %v1383 = vld [vmem:[#allocation3] sm:$0x1]
    %v1385 = vlaneseq
    %v1386 = vshrl.u32 %v1385, 7
    %v1387 = vsub.s32 0, %v1386
    %v1388 = vrot.slane %v1383, %v1387
    %v1391 = vsel %vm103, %v1378, 0
    %1393 = vmatprep.subr.mxu0 0.0
    %1394 = vmatpush1.msra.mxu0 %v1379
    %1395 = vmatprep.subr.mxu0 0.0
    %1396 = vmatpush1.msra.mxu0 %v1380
    %1397 = vmatprep.subr.mxu0 0.0
    %1398 = vmatpush1.msra.mxu0 %v1381
    %1399 = vmatprep.subr.mxu0 0.0
    %1400 = vmatpush1.msra.mxu0 %v1382
    %1401 = vmatprep.subr.mxu0 0.0
    %1402 = vmatpush1.msra.mxu0 0.0
    %1403 = vmatprep.subr.mxu0 0.0
    %1404 = vmatpush1.msra.mxu0 0.0
    %1405 = vmatprep.subr.mxu0 0.0
    %1406 = vmatpush1.msra.mxu0 0.0
    %1407 = vmatprep.subr.mxu0 0.0
    %1408 = vmatpush1.msra.mxu0 0.0
    %1409 = vmatprep.subr.mxu0 0.0
    %1410 = vmatpush1.msra.mxu0 0.0
    %1411 = vmatprep.subr.mxu0 0.0
    %1412 = vmatpush1.msra.mxu0 0.0
    %1413 = vmatprep.subr.mxu0 0.0
    %1414 = vmatpush1.msra.mxu0 0.0
    %1415 = vmatprep.subr.mxu0 0.0
    %1416 = vmatpush1.msra.mxu0 0.0
    %1417 = vmatprep.subr.mxu0 0.0
    %1418 = vmatpush1.msra.mxu0 0.0
    %1419 = vmatprep.subr.mxu0 0.0
    %1420 = vmatpush1.msra.mxu0 0.0
    %1421 = vmatprep.subr.mxu0 0.0
    %1422 = vmatpush1.msra.mxu0 0.0
    %1423 = vmatprep.subr.mxu0 0.0
    %1424 = vmatpush1.msra.mxu0 0.0
    %1425 = vmatprep.subr.mxu0 0.0
    %1426 = vmatpush1.msra.mxu0 0.0
    %1427 = vmatprep.subr.mxu0 0.0
    %1428 = vmatpush1.msra.mxu0 0.0
    %1429 = vmatprep.subr.mxu0 0.0
    %1430 = vmatpush1.msra.mxu0 0.0
    %1431 = vmatprep.subr.mxu0 0.0
    %1432 = vmatpush1.msra.mxu0 0.0
    %1433 = vmatprep.subr.mxu0 0.0
    %1434 = vmatpush1.msra.mxu0 0.0
    %1435 = vmatprep.subr.mxu0 0.0
    %1436 = vmatpush1.msra.mxu0 0.0
    %1437 = vmatprep.subr.mxu0 0.0
    %1438 = vmatpush1.msra.mxu0 0.0
    %1439 = vmatprep.subr.mxu0 0.0
    %1440 = vmatpush1.msra.mxu0 0.0
    %1441 = vmatprep.subr.mxu0 0.0
    %1442 = vmatpush1.msra.mxu0 0.0
    %1443 = vmatprep.subr.mxu0 0.0
    %1444 = vmatpush1.msra.mxu0 0.0
    %1445 = vmatprep.subr.mxu0 0.0
    %1446 = vmatpush1.msra.mxu0 0.0
    %1447 = vmatprep.subr.mxu0 0.0
    %1448 = vmatpush1.msra.mxu0 0.0
    %1449 = vmatprep.subr.mxu0 0.0
    %1450 = vmatpush1.msra.mxu0 0.0
    %1451 = vmatprep.subr.mxu0 0.0
    %1452 = vmatpush1.msra.mxu0 0.0
    %1453 = vmatprep.subr.mxu0 0.0
    %1454 = vmatpush1.msra.mxu0 0.0
    %1455 = vmatprep.subr.mxu0 0.0
    %1456 = vmatpush1.msra.mxu0 0.0
    %1457 = vmatprep.mubr.f32.mxu0 0.0
    %1458 = vmatmul.mubr.f32.gmra.mrb[0].mxu0 %v1391
    %v1459 = vpop.f32.mrb[0].mxu0
    %v1460 = vadd.f32 %v1388, %v1459
    %v1461 = vpop.f32.mrb[0].mxu0
    %1462 = vdwg.mxu0
    %vm1463 = vcmask 7168
    %1464 = vst.msk [vmem:[%s8] sm:$0xff] %vm1463, %v1460
    // Predicated region
    $region46: #{lstm_forward.1} parent=1 // pred_check
      _
    $region47: #{lstm_forward.1} parent=1 // pred_check_branch
      %1466 = sbr.rel (0) target = $region49
    $region48: #{lstm_forward.1} parent=1 // pred_region
      _
    $region49: #{lstm_forward.1} parent=1 // pred_fallthru
      _
    // Predicated region
    $region50: #{lstm_forward.1} parent=1 // pred_check
      _
    $region51: #{lstm_forward.1} parent=1 // pred_check_branch
      %1468 = sbr.rel (0) target = $region53
    $region52: #{lstm_forward.1} parent=1 // pred_region
      _
    $region53: #{lstm_forward.1} parent=1 // pred_fallthru
      _
    %1469 = vsyncpa [#allocation5], 1
    %1470 = vsyncpa [#allocation7], 1

</llo_original>
